<compile_context>
chip_gen: v6e
topology: v6e:2x2x1
jax: 0.10.0
libtpu: 0.0.40
codegen_flags: <defaults>
</compile_context>

<pallas_src>
import functools

import jax
import jax.numpy as jnp
from jax.experimental import pallas as pl
from jax.experimental.pallas import tpu as pltpu

# Norse LIF / LI default parameters (dt = 1e-3)
DT = 1e-3
TAU_MEM_INV = 100.0   # 1 / tau_mem = 1 / 1e-2
TAU_SYN_INV = 200.0   # 1 / tau_syn = 1 / 5e-3
V_TH = 1.0
V_LEAK = 0.0
V_RESET = 0.0
SEQ_LEN = 10          # ConstantCurrentLIFEncoder(10)
HIDDEN = 128          # lif_1 hidden size fixed by the module
SCALE = 50.0          # `scale = 50` in forward
LANES = 128           # lane-dense padding of the action dimension


def snn_qnet_kernel(x_ref, w_in_ref, w_rec_ref, w_ro_ref, q_ref, *, actions):
    f32 = jnp.float32
    bf16 = jnp.bfloat16

    x = x_ref[...].astype(f32)
    bb, state = x.shape
    hidden = w_rec_ref.shape[0]
    a_pad = w_ro_ref.shape[1]

    # ---------- Phase 1: constant-current LIF encoder (register-resident) ----------
    # Input currents are loop-invariant; the 10 encoder updates are pure VPU work
    # on one fused (bb, 2*state) buffer.  Spike frames stay in registers and are
    # concatenated once into the bf16 operand of the phase-2 matmul.
    i_const = jnp.concatenate(
        [jnp.maximum(SCALE * x, 0.0), jnp.maximum(-SCALE * x, 0.0)], axis=-1)
    drive = DT * TAU_MEM_INV * (V_LEAK + i_const)          # loop-invariant
    decay = 1.0 - DT * TAU_MEM_INV
    v_enc = jnp.zeros((bb, 2 * state), f32)
    enc_frames = []
    for _ in range(SEQ_LEN):
        v_enc = v_enc * decay + drive
        spk = v_enc > V_TH
        enc_frames.append(jnp.where(spk, 1.0, 0.0).astype(bf16))   # exact 0/1 in bf16
        v_enc = jnp.where(spk, V_RESET, v_enc)
    spikes_all = jnp.concatenate(enc_frames, axis=0)       # (T*bb, 2*state) bf16

    # ---------- Phase 2: one batched input projection ----------
    cur_in = jnp.dot(spikes_all, w_in_ref[...],
                     preferred_element_type=f32)           # (T*bb, hidden) f32

    # ---------- Phase 3: recurrent LIF loop ----------
    # Only the z1 @ w_rec recurrence stays on the serial chain; z carried in bf16.
    w_rec = w_rec_ref[...]
    z_prev = jnp.zeros((bb, hidden), bf16)
    v1 = jnp.zeros((bb, hidden), f32)
    i1 = jnp.zeros((bb, hidden), f32)
    z_frames = []
    for t in range(SEQ_LEN):
        # norse lif_step: decay from OLD state, spike, reset, then current jumps.
        v_dec = v1 + DT * TAU_MEM_INV * ((V_LEAK - v1) + i1)
        i_dec = i1 - DT * TAU_SYN_INV * i1
        spk = v_dec > V_TH
        z_new = jnp.where(spk, 1.0, 0.0).astype(bf16)      # emitted directly as bf16
        v1 = jnp.where(spk, V_RESET, v_dec)
        rec = (jnp.dot(z_prev, w_rec, preferred_element_type=f32)
               if t > 0 else 0.0)                          # z_prev == 0 at t == 0
        i1 = i_dec + cur_in[t * bb:(t + 1) * bb, :] + rec
        z_prev = z_new
        z_frames.append(z_new)
    z_all = jnp.concatenate(z_frames, axis=0)              # (T*bb, hidden) bf16

    # Dropout(p=0.5): inference/eval semantics -> identity.
    # TODO(synk): training-mode dropout (Bernoulli mask + 2x rescale via pltpu.prng_*) not implemented.

    # ---------- Phase 4: one batched readout projection + LI replay ----------
    ro = jnp.dot(z_all, w_ro_ref[...],
                 preferred_element_type=f32)               # (T*bb, a_pad) f32, lane-dense
    v2 = jnp.zeros((bb, a_pad), f32)
    i2 = jnp.zeros((bb, a_pad), f32)
    max_v = jnp.full((bb, a_pad), -jnp.inf, f32)
    for t in range(SEQ_LEN):
        # norse li_step: dv from the OLD synaptic current, then decay i and add input.
        v2 = v2 + DT * TAU_MEM_INV * ((V_LEAK - v2) + i2)
        i2 = i2 - DT * TAU_SYN_INV * i2 + ro[t * bb:(t + 1) * bb, :]
        max_v = jnp.maximum(max_v, v2)                     # == torch.max(voltages, 0)

    # ---------- Phase 5: softmax over the real action lanes ----------
    lane = jax.lax.broadcasted_iota(jnp.int32, (bb, a_pad), 1)
    valid = lane < actions
    mv = jnp.where(valid, max_v, -jnp.inf)
    shifted = mv - jnp.max(mv, axis=-1, keepdims=True)
    e = jnp.where(valid, jnp.exp(shifted), 0.0)
    q_ref[...] = (e / jnp.sum(e, axis=-1, keepdims=True)).astype(q_ref.dtype)


def snn_qnet_forward(x, w_in, w_rec, w_ro, *, block_b=256):
    """x: (batch, state_space) f32; weights stored transposed (in_features, out_features)."""
    batch, state = x.shape
    hidden = w_rec.shape[0]
    actions = w_ro.shape[1]
    a_pad = max(LANES, pl.cdiv(actions, LANES) * LANES)

    # Batch tiling: one block if it fits, otherwise a parallel grid over 256-row
    # batch blocks (shards across v7x's two TensorCores, double-buffers x blocks).
    bb = batch if batch <= block_b else block_b
    padded = pl.cdiv(batch, bb) * bb
    x_p = jnp.pad(x, ((0, padded - batch), (0, 0))) if padded != batch else x

    # bf16 MXU operands: spikes are exact 0/1 in bf16; weight rounding is the only
    # precision loss, accumulation stays f32 via preferred_element_type.
    w_in_b = w_in.astype(jnp.bfloat16)
    w_rec_b = w_rec.astype(jnp.bfloat16)
    # Zero-pad the action dim to a full 128-lane tile (lane-dense readout path).
    w_ro_b = jnp.zeros((hidden, a_pad), jnp.bfloat16).at[:, :actions].set(
        w_ro.astype(jnp.bfloat16))

    vmem = pltpu.MemorySpace.VMEM
    q_pad = pl.pallas_call(
        functools.partial(snn_qnet_kernel, actions=actions),
        out_shape=jax.ShapeDtypeStruct((padded, a_pad), jnp.float32),
        grid_spec=pltpu.PrefetchScalarGridSpec(
            num_scalar_prefetch=0,
            grid=(padded // bb,),
            in_specs=[
                pl.BlockSpec((bb, state), lambda i: (i, 0)),   # x batch block
                pl.BlockSpec(memory_space=vmem),               # w_in (whole array)
                pl.BlockSpec(memory_space=vmem),               # w_rec (whole array)
                pl.BlockSpec(memory_space=vmem),               # w_ro padded (whole array)
            ],
            out_specs=pl.BlockSpec((bb, a_pad), lambda i: (i, 0)),
        ),
        compiler_params=pltpu.CompilerParams(
            dimension_semantics=("parallel",)),
    )(x_p, w_in_b, w_rec_b, w_ro_b)
    return q_pad[:batch, :actions]


def _ref_forward(x, w_in, w_rec, w_ro):
    """Pure-JAX reference (same bf16 weight rounding) for a tolerance-based check."""
    f32 = jnp.float32
    wi = w_in.astype(jnp.bfloat16).astype(f32)
    wr = w_rec.astype(jnp.bfloat16).astype(f32)
    wo = w_ro.astype(jnp.bfloat16).astype(f32)
    batch, _ = x.shape
    hidden = wr.shape[0]
    actions = wo.shape[1]

    i_const = jnp.concatenate(
        [jnp.maximum(SCALE * x, 0.0), jnp.maximum(-SCALE * x, 0.0)], axis=-1)
    v_enc = jnp.zeros_like(i_const)
    spikes = []
    for _ in range(SEQ_LEN):
        v_enc = v_enc + DT * TAU_MEM_INV * ((V_LEAK - v_enc) + i_const)
        z = (v_enc > V_TH).astype(f32)
        spikes.append(z)
        v_enc = jnp.where(z > 0, V_RESET, v_enc)

    z1 = jnp.zeros((batch, hidden), f32)
    v1 = jnp.zeros((batch, hidden), f32)
    i1 = jnp.zeros((batch, hidden), f32)
    v2 = jnp.zeros((batch, actions), f32)
    i2 = jnp.zeros((batch, actions), f32)
    max_v = jnp.full((batch, actions), -jnp.inf, f32)
    for t in range(SEQ_LEN):
        v_dec = v1 + DT * TAU_MEM_INV * ((V_LEAK - v1) + i1)
        i_dec = i1 - DT * TAU_SYN_INV * i1
        z_new = (v_dec > V_TH).astype(f32)
        v1 = jnp.where(z_new > 0, V_RESET, v_dec)
        i1 = i_dec + spikes[t] @ wi + z1 @ wr
        z1 = z_new
        # dropout (eval) = identity; LI readout (norse li_step ordering)
        inp = z_new @ wo
        v2 = v2 + DT * TAU_MEM_INV * ((V_LEAK - v2) + i2)
        i2 = i2 - DT * TAU_SYN_INV * i2 + inp
        max_v = jnp.maximum(max_v, v2)
    return jax.nn.softmax(max_v, axis=-1)


if __name__ == "__main__":
    state_space = 4
    action_space = 2
    batch = 2

    key = jax.random.PRNGKey(0)
    k_x, k_in, k_rec, k_ro = jax.random.split(key, 4)

    # Deterministic parameters matching the PyTorch module's shapes
    # (stored transposed: (in_features, out_features)).
    x = jax.random.normal(k_x, (batch, state_space), jnp.float32)
    w_in = jax.random.normal(k_in, (2 * state_space, HIDDEN), jnp.float32) * jnp.sqrt(2.0 / HIDDEN)
    w_rec = jax.random.normal(k_rec, (HIDDEN, HIDDEN), jnp.float32) * jnp.sqrt(2.0 / HIDDEN)
    w_ro = jax.random.normal(k_ro, (HIDDEN, action_space), jnp.float32) / jnp.sqrt(float(HIDDEN))

    q = snn_qnet_forward(x, w_in, w_rec, w_ro)
    q = jax.block_until_ready(q)

    assert q.shape == (batch, action_space)
    assert bool(jnp.all(jnp.isfinite(q)))
    assert bool(jnp.allclose(jnp.sum(q, axis=-1), 1.0, atol=1e-5))

    q_ref = _ref_forward(x, w_in, w_rec, w_ro)
    assert bool(jnp.allclose(q, q_ref, atol=5e-3)), (q, q_ref)

    print("KERNEL_OK")
</pallas_src>

<mosaic_0001>
module attributes {stable_mosaic.version = 11 : i64} {
  func.func @snn_qnet_kernel(%arg0: i32, %arg1: memref<2x4xf32, #tpu.memory_space<vmem>>, %arg2: memref<8x128xbf16, #tpu.memory_space<vmem>>, %arg3: memref<128x128xbf16, #tpu.memory_space<vmem>>, %arg4: memref<128x128xbf16, #tpu.memory_space<vmem>>, %arg5: memref<2x128xf32, #tpu.memory_space<vmem>>) attributes {dimension_semantics = [#tpu.dimension_semantics<parallel>], iteration_bounds = array<i64: 1>, scalar_prefetch = 0 : i64, scratch_operands = 0 : i64, tpu.core_type = #tpu.core_type<tc>, window_params = [{transform_indices = @transform_0, window_bounds = array<i64: 2, 4>}, {pipeline_mode = #tpu.pipeline_mode<synchronous>, transform_indices = @transform_1, window_bounds = array<i64: 8, 128>}, {pipeline_mode = #tpu.pipeline_mode<synchronous>, transform_indices = @transform_2, window_bounds = array<i64: 128, 128>}, {pipeline_mode = #tpu.pipeline_mode<synchronous>, transform_indices = @transform_3, window_bounds = array<i64: 128, 128>}, {transform_indices = @transform_4, window_bounds = array<i64: 2, 128>}]} {
    %c0 = arith.constant 0 : index
    %c0_0 = arith.constant 0 : index
    %0 = vector.load %arg1[%c0, %c0_0] : memref<2x4xf32, #tpu.memory_space<vmem>>, vector<2x4xf32>
    %cst = arith.constant 5.000000e+01 : f32
    %1 = vector.broadcast %cst : f32 to vector<2x4xf32>
    %2 = arith.mulf %1, %0 : vector<2x4xf32>
    %cst_1 = arith.constant 0.000000e+00 : f32
    %3 = vector.broadcast %cst_1 : f32 to vector<2x4xf32>
    %4 = arith.maximumf %2, %3 : vector<2x4xf32>
    %cst_2 = arith.constant -5.000000e+01 : f32
    %5 = vector.broadcast %cst_2 : f32 to vector<2x4xf32>
    %6 = arith.mulf %5, %0 : vector<2x4xf32>
    %cst_3 = arith.constant 0.000000e+00 : f32
    %7 = vector.broadcast %cst_3 : f32 to vector<2x4xf32>
    %8 = arith.maximumf %6, %7 : vector<2x4xf32>
    %9 = tpu.concatenate %4, %8 in 1 : vector<2x4xf32>, vector<2x4xf32> -> vector<2x8xf32>
    %cst_4 = arith.constant 0.000000e+00 : f32
    %10 = vector.broadcast %cst_4 : f32 to vector<2x8xf32>
    %11 = arith.addf %10, %9 : vector<2x8xf32>
    %cst_5 = arith.constant 1.000000e-01 : f32
    %12 = vector.broadcast %cst_5 : f32 to vector<2x8xf32>
    %13 = arith.mulf %12, %11 : vector<2x8xf32>
    %cst_6 = arith.constant 0.000000e+00 : f32
    %14 = vector.broadcast %cst_6 : f32 to vector<2x8xf32>
    %cst_7 = arith.constant 0.899999976 : f32
    %15 = vector.broadcast %cst_7 : f32 to vector<2x8xf32>
    %16 = arith.mulf %14, %15 : vector<2x8xf32>
    %17 = arith.addf %16, %13 : vector<2x8xf32>
    %cst_8 = arith.constant 1.000000e+00 : f32
    %18 = vector.broadcast %cst_8 : f32 to vector<2x8xf32>
    %19 = arith.cmpf ogt, %17, %18 : vector<2x8xf32>
    %cst_9 = arith.constant 1.000000e+00 : f32
    %cst_10 = arith.constant 0.000000e+00 : f32
    %20 = vector.broadcast %cst_9 : f32 to vector<2x8xf32>
    %21 = vector.broadcast %cst_10 : f32 to vector<2x8xf32>
    %22 = arith.select %19, %20, %21 : vector<2x8xi1>, vector<2x8xf32>
    %23 = arith.truncf %22 : vector<2x8xf32> to vector<2x8xbf16>
    %cst_11 = arith.constant 0.000000e+00 : f32
    %24 = vector.broadcast %cst_11 : f32 to vector<2x8xf32>
    %25 = arith.select %19, %24, %17 : vector<2x8xi1>, vector<2x8xf32>
    %cst_12 = arith.constant 0.899999976 : f32
    %26 = vector.broadcast %cst_12 : f32 to vector<2x8xf32>
    %27 = arith.mulf %25, %26 : vector<2x8xf32>
    %28 = arith.addf %27, %13 : vector<2x8xf32>
    %cst_13 = arith.constant 1.000000e+00 : f32
    %29 = vector.broadcast %cst_13 : f32 to vector<2x8xf32>
    %30 = arith.cmpf ogt, %28, %29 : vector<2x8xf32>
    %cst_14 = arith.constant 1.000000e+00 : f32
    %cst_15 = arith.constant 0.000000e+00 : f32
    %31 = vector.broadcast %cst_14 : f32 to vector<2x8xf32>
    %32 = vector.broadcast %cst_15 : f32 to vector<2x8xf32>
    %33 = arith.select %30, %31, %32 : vector<2x8xi1>, vector<2x8xf32>
    %34 = arith.truncf %33 : vector<2x8xf32> to vector<2x8xbf16>
    %cst_16 = arith.constant 0.000000e+00 : f32
    %35 = vector.broadcast %cst_16 : f32 to vector<2x8xf32>
    %36 = arith.select %30, %35, %28 : vector<2x8xi1>, vector<2x8xf32>
    %cst_17 = arith.constant 0.899999976 : f32
    %37 = vector.broadcast %cst_17 : f32 to vector<2x8xf32>
    %38 = arith.mulf %36, %37 : vector<2x8xf32>
    %39 = arith.addf %38, %13 : vector<2x8xf32>
    %cst_18 = arith.constant 1.000000e+00 : f32
    %40 = vector.broadcast %cst_18 : f32 to vector<2x8xf32>
    %41 = arith.cmpf ogt, %39, %40 : vector<2x8xf32>
    %cst_19 = arith.constant 1.000000e+00 : f32
    %cst_20 = arith.constant 0.000000e+00 : f32
    %42 = vector.broadcast %cst_19 : f32 to vector<2x8xf32>
    %43 = vector.broadcast %cst_20 : f32 to vector<2x8xf32>
    %44 = arith.select %41, %42, %43 : vector<2x8xi1>, vector<2x8xf32>
    %45 = arith.truncf %44 : vector<2x8xf32> to vector<2x8xbf16>
    %cst_21 = arith.constant 0.000000e+00 : f32
    %46 = vector.broadcast %cst_21 : f32 to vector<2x8xf32>
    %47 = arith.select %41, %46, %39 : vector<2x8xi1>, vector<2x8xf32>
    %cst_22 = arith.constant 0.899999976 : f32
    %48 = vector.broadcast %cst_22 : f32 to vector<2x8xf32>
    %49 = arith.mulf %47, %48 : vector<2x8xf32>
    %50 = arith.addf %49, %13 : vector<2x8xf32>
    %cst_23 = arith.constant 1.000000e+00 : f32
    %51 = vector.broadcast %cst_23 : f32 to vector<2x8xf32>
    %52 = arith.cmpf ogt, %50, %51 : vector<2x8xf32>
    %cst_24 = arith.constant 1.000000e+00 : f32
    %cst_25 = arith.constant 0.000000e+00 : f32
    %53 = vector.broadcast %cst_24 : f32 to vector<2x8xf32>
    %54 = vector.broadcast %cst_25 : f32 to vector<2x8xf32>
    %55 = arith.select %52, %53, %54 : vector<2x8xi1>, vector<2x8xf32>
    %56 = arith.truncf %55 : vector<2x8xf32> to vector<2x8xbf16>
    %cst_26 = arith.constant 0.000000e+00 : f32
    %57 = vector.broadcast %cst_26 : f32 to vector<2x8xf32>
    %58 = arith.select %52, %57, %50 : vector<2x8xi1>, vector<2x8xf32>
    %cst_27 = arith.constant 0.899999976 : f32
    %59 = vector.broadcast %cst_27 : f32 to vector<2x8xf32>
    %60 = arith.mulf %58, %59 : vector<2x8xf32>
    %61 = arith.addf %60, %13 : vector<2x8xf32>
    %cst_28 = arith.constant 1.000000e+00 : f32
    %62 = vector.broadcast %cst_28 : f32 to vector<2x8xf32>
    %63 = arith.cmpf ogt, %61, %62 : vector<2x8xf32>
    %cst_29 = arith.constant 1.000000e+00 : f32
    %cst_30 = arith.constant 0.000000e+00 : f32
    %64 = vector.broadcast %cst_29 : f32 to vector<2x8xf32>
    %65 = vector.broadcast %cst_30 : f32 to vector<2x8xf32>
    %66 = arith.select %63, %64, %65 : vector<2x8xi1>, vector<2x8xf32>
    %67 = arith.truncf %66 : vector<2x8xf32> to vector<2x8xbf16>
    %cst_31 = arith.constant 0.000000e+00 : f32
    %68 = vector.broadcast %cst_31 : f32 to vector<2x8xf32>
    %69 = arith.select %63, %68, %61 : vector<2x8xi1>, vector<2x8xf32>
    %cst_32 = arith.constant 0.899999976 : f32
    %70 = vector.broadcast %cst_32 : f32 to vector<2x8xf32>
    %71 = arith.mulf %69, %70 : vector<2x8xf32>
    %72 = arith.addf %71, %13 : vector<2x8xf32>
    %cst_33 = arith.constant 1.000000e+00 : f32
    %73 = vector.broadcast %cst_33 : f32 to vector<2x8xf32>
    %74 = arith.cmpf ogt, %72, %73 : vector<2x8xf32>
    %cst_34 = arith.constant 1.000000e+00 : f32
    %cst_35 = arith.constant 0.000000e+00 : f32
    %75 = vector.broadcast %cst_34 : f32 to vector<2x8xf32>
    %76 = vector.broadcast %cst_35 : f32 to vector<2x8xf32>
    %77 = arith.select %74, %75, %76 : vector<2x8xi1>, vector<2x8xf32>
    %78 = arith.truncf %77 : vector<2x8xf32> to vector<2x8xbf16>
    %cst_36 = arith.constant 0.000000e+00 : f32
    %79 = vector.broadcast %cst_36 : f32 to vector<2x8xf32>
    %80 = arith.select %74, %79, %72 : vector<2x8xi1>, vector<2x8xf32>
    %cst_37 = arith.constant 0.899999976 : f32
    %81 = vector.broadcast %cst_37 : f32 to vector<2x8xf32>
    %82 = arith.mulf %80, %81 : vector<2x8xf32>
    %83 = arith.addf %82, %13 : vector<2x8xf32>
    %cst_38 = arith.constant 1.000000e+00 : f32
    %84 = vector.broadcast %cst_38 : f32 to vector<2x8xf32>
    %85 = arith.cmpf ogt, %83, %84 : vector<2x8xf32>
    %cst_39 = arith.constant 1.000000e+00 : f32
    %cst_40 = arith.constant 0.000000e+00 : f32
    %86 = vector.broadcast %cst_39 : f32 to vector<2x8xf32>
    %87 = vector.broadcast %cst_40 : f32 to vector<2x8xf32>
    %88 = arith.select %85, %86, %87 : vector<2x8xi1>, vector<2x8xf32>
    %89 = arith.truncf %88 : vector<2x8xf32> to vector<2x8xbf16>
    %cst_41 = arith.constant 0.000000e+00 : f32
    %90 = vector.broadcast %cst_41 : f32 to vector<2x8xf32>
    %91 = arith.select %85, %90, %83 : vector<2x8xi1>, vector<2x8xf32>
    %cst_42 = arith.constant 0.899999976 : f32
    %92 = vector.broadcast %cst_42 : f32 to vector<2x8xf32>
    %93 = arith.mulf %91, %92 : vector<2x8xf32>
    %94 = arith.addf %93, %13 : vector<2x8xf32>
    %cst_43 = arith.constant 1.000000e+00 : f32
    %95 = vector.broadcast %cst_43 : f32 to vector<2x8xf32>
    %96 = arith.cmpf ogt, %94, %95 : vector<2x8xf32>
    %cst_44 = arith.constant 1.000000e+00 : f32
    %cst_45 = arith.constant 0.000000e+00 : f32
    %97 = vector.broadcast %cst_44 : f32 to vector<2x8xf32>
    %98 = vector.broadcast %cst_45 : f32 to vector<2x8xf32>
    %99 = arith.select %96, %97, %98 : vector<2x8xi1>, vector<2x8xf32>
    %100 = arith.truncf %99 : vector<2x8xf32> to vector<2x8xbf16>
    %cst_46 = arith.constant 0.000000e+00 : f32
    %101 = vector.broadcast %cst_46 : f32 to vector<2x8xf32>
    %102 = arith.select %96, %101, %94 : vector<2x8xi1>, vector<2x8xf32>
    %cst_47 = arith.constant 0.899999976 : f32
    %103 = vector.broadcast %cst_47 : f32 to vector<2x8xf32>
    %104 = arith.mulf %102, %103 : vector<2x8xf32>
    %105 = arith.addf %104, %13 : vector<2x8xf32>
    %cst_48 = arith.constant 1.000000e+00 : f32
    %106 = vector.broadcast %cst_48 : f32 to vector<2x8xf32>
    %107 = arith.cmpf ogt, %105, %106 : vector<2x8xf32>
    %cst_49 = arith.constant 1.000000e+00 : f32
    %cst_50 = arith.constant 0.000000e+00 : f32
    %108 = vector.broadcast %cst_49 : f32 to vector<2x8xf32>
    %109 = vector.broadcast %cst_50 : f32 to vector<2x8xf32>
    %110 = arith.select %107, %108, %109 : vector<2x8xi1>, vector<2x8xf32>
    %111 = arith.truncf %110 : vector<2x8xf32> to vector<2x8xbf16>
    %cst_51 = arith.constant 0.000000e+00 : f32
    %112 = vector.broadcast %cst_51 : f32 to vector<2x8xf32>
    %113 = arith.select %107, %112, %105 : vector<2x8xi1>, vector<2x8xf32>
    %cst_52 = arith.constant 0.899999976 : f32
    %114 = vector.broadcast %cst_52 : f32 to vector<2x8xf32>
    %115 = arith.mulf %113, %114 : vector<2x8xf32>
    %116 = arith.addf %115, %13 : vector<2x8xf32>
    %cst_53 = arith.constant 1.000000e+00 : f32
    %117 = vector.broadcast %cst_53 : f32 to vector<2x8xf32>
    %118 = arith.cmpf ogt, %116, %117 : vector<2x8xf32>
    %cst_54 = arith.constant 1.000000e+00 : f32
    %cst_55 = arith.constant 0.000000e+00 : f32
    %119 = vector.broadcast %cst_54 : f32 to vector<2x8xf32>
    %120 = vector.broadcast %cst_55 : f32 to vector<2x8xf32>
    %121 = arith.select %118, %119, %120 : vector<2x8xi1>, vector<2x8xf32>
    %122 = arith.truncf %121 : vector<2x8xf32> to vector<2x8xbf16>
    %123 = tpu.concatenate %23, %34, %45, %56, %67, %78, %89, %100, %111, %122 in 0 : vector<2x8xbf16>, vector<2x8xbf16>, vector<2x8xbf16>, vector<2x8xbf16>, vector<2x8xbf16>, vector<2x8xbf16>, vector<2x8xbf16>, vector<2x8xbf16>, vector<2x8xbf16>, vector<2x8xbf16> -> vector<20x8xbf16>
    %c0_56 = arith.constant 0 : index
    %c0_57 = arith.constant 0 : index
    %124 = vector.load %arg2[%c0_56, %c0_57] : memref<8x128xbf16, #tpu.memory_space<vmem>>, vector<8x128xbf16>
    %cst_58 = arith.constant dense<0.000000e+00> : vector<20x128xf32>
    %125 = tpu.matmul %123, %124, %cst_58 {dimension_numbers = #tpu.dot_dimension_numbers<[1], [0], [0], [1], [0, 0, 1, 1], [], []>} : vector<20x8xbf16>, vector<8x128xbf16>, vector<20x128xf32> -> vector<20x128xf32>
    %c0_59 = arith.constant 0 : index
    %c0_60 = arith.constant 0 : index
    %126 = vector.load %arg3[%c0_59, %c0_60] : memref<128x128xbf16, #tpu.memory_space<vmem>>, vector<128x128xbf16>
    %cst_61 = arith.constant 0.000000e+00 : f32
    %127 = vector.broadcast %cst_61 : f32 to vector<2x128xf32>
    %cst_62 = arith.constant 0.000000e+00 : f32
    %128 = vector.broadcast %cst_62 : f32 to vector<2x128xf32>
    %cst_63 = arith.constant 0.000000e+00 : f32
    %129 = vector.broadcast %cst_63 : f32 to vector<2x128xf32>
    %130 = arith.subf %129, %127 : vector<2x128xf32>
    %131 = arith.addf %130, %128 : vector<2x128xf32>
    %cst_64 = arith.constant 1.000000e-01 : f32
    %132 = vector.broadcast %cst_64 : f32 to vector<2x128xf32>
    %133 = arith.mulf %132, %131 : vector<2x128xf32>
    %134 = arith.addf %127, %133 : vector<2x128xf32>
    %cst_65 = arith.constant 2.000000e-01 : f32
    %135 = vector.broadcast %cst_65 : f32 to vector<2x128xf32>
    %136 = arith.mulf %135, %128 : vector<2x128xf32>
    %137 = arith.subf %128, %136 : vector<2x128xf32>
    %cst_66 = arith.constant 1.000000e+00 : f32
    %138 = vector.broadcast %cst_66 : f32 to vector<2x128xf32>
    %139 = arith.cmpf ogt, %134, %138 : vector<2x128xf32>
    %cst_67 = arith.constant 1.000000e+00 : f32
    %cst_68 = arith.constant 0.000000e+00 : f32
    %140 = vector.broadcast %cst_67 : f32 to vector<2x128xf32>
    %141 = vector.broadcast %cst_68 : f32 to vector<2x128xf32>
    %142 = arith.select %139, %140, %141 : vector<2x128xi1>, vector<2x128xf32>
    %143 = arith.truncf %142 : vector<2x128xf32> to vector<2x128xbf16>
    %cst_69 = arith.constant 0.000000e+00 : f32
    %144 = vector.broadcast %cst_69 : f32 to vector<2x128xf32>
    %145 = arith.select %139, %144, %134 : vector<2x128xi1>, vector<2x128xf32>
    %146 = vector.extract_strided_slice %125 {offsets = [0, 0], sizes = [2, 128], strides = [1, 1]} : vector<20x128xf32> to vector<2x128xf32>
    %147 = arith.addf %137, %146 : vector<2x128xf32>
    %cst_70 = arith.constant 0.000000e+00 : f32
    %148 = vector.broadcast %cst_70 : f32 to vector<2x128xf32>
    %149 = arith.addf %147, %148 : vector<2x128xf32>
    %cst_71 = arith.constant 0.000000e+00 : f32
    %150 = vector.broadcast %cst_71 : f32 to vector<2x128xf32>
    %151 = arith.subf %150, %145 : vector<2x128xf32>
    %152 = arith.addf %151, %149 : vector<2x128xf32>
    %cst_72 = arith.constant 1.000000e-01 : f32
    %153 = vector.broadcast %cst_72 : f32 to vector<2x128xf32>
    %154 = arith.mulf %153, %152 : vector<2x128xf32>
    %155 = arith.addf %145, %154 : vector<2x128xf32>
    %cst_73 = arith.constant 2.000000e-01 : f32
    %156 = vector.broadcast %cst_73 : f32 to vector<2x128xf32>
    %157 = arith.mulf %156, %149 : vector<2x128xf32>
    %158 = arith.subf %149, %157 : vector<2x128xf32>
    %cst_74 = arith.constant 1.000000e+00 : f32
    %159 = vector.broadcast %cst_74 : f32 to vector<2x128xf32>
    %160 = arith.cmpf ogt, %155, %159 : vector<2x128xf32>
    %cst_75 = arith.constant 1.000000e+00 : f32
    %cst_76 = arith.constant 0.000000e+00 : f32
    %161 = vector.broadcast %cst_75 : f32 to vector<2x128xf32>
    %162 = vector.broadcast %cst_76 : f32 to vector<2x128xf32>
    %163 = arith.select %160, %161, %162 : vector<2x128xi1>, vector<2x128xf32>
    %164 = arith.truncf %163 : vector<2x128xf32> to vector<2x128xbf16>
    %cst_77 = arith.constant 0.000000e+00 : f32
    %165 = vector.broadcast %cst_77 : f32 to vector<2x128xf32>
    %166 = arith.select %160, %165, %155 : vector<2x128xi1>, vector<2x128xf32>
    %cst_78 = arith.constant dense<0.000000e+00> : vector<2x128xf32>
    %167 = tpu.matmul %143, %126, %cst_78 {dimension_numbers = #tpu.dot_dimension_numbers<[1], [0], [0], [1], [0, 0, 1, 1], [], []>} : vector<2x128xbf16>, vector<128x128xbf16>, vector<2x128xf32> -> vector<2x128xf32>
    %168 = vector.extract_strided_slice %125 {offsets = [2, 0], sizes = [2, 128], strides = [1, 1]} : vector<20x128xf32> to vector<2x128xf32>
    %169 = arith.addf %158, %168 : vector<2x128xf32>
    %170 = arith.addf %169, %167 : vector<2x128xf32>
    %cst_79 = arith.constant 0.000000e+00 : f32
    %171 = vector.broadcast %cst_79 : f32 to vector<2x128xf32>
    %172 = arith.subf %171, %166 : vector<2x128xf32>
    %173 = arith.addf %172, %170 : vector<2x128xf32>
    %cst_80 = arith.constant 1.000000e-01 : f32
    %174 = vector.broadcast %cst_80 : f32 to vector<2x128xf32>
    %175 = arith.mulf %174, %173 : vector<2x128xf32>
    %176 = arith.addf %166, %175 : vector<2x128xf32>
    %cst_81 = arith.constant 2.000000e-01 : f32
    %177 = vector.broadcast %cst_81 : f32 to vector<2x128xf32>
    %178 = arith.mulf %177, %170 : vector<2x128xf32>
    %179 = arith.subf %170, %178 : vector<2x128xf32>
    %cst_82 = arith.constant 1.000000e+00 : f32
    %180 = vector.broadcast %cst_82 : f32 to vector<2x128xf32>
    %181 = arith.cmpf ogt, %176, %180 : vector<2x128xf32>
    %cst_83 = arith.constant 1.000000e+00 : f32
    %cst_84 = arith.constant 0.000000e+00 : f32
    %182 = vector.broadcast %cst_83 : f32 to vector<2x128xf32>
    %183 = vector.broadcast %cst_84 : f32 to vector<2x128xf32>
    %184 = arith.select %181, %182, %183 : vector<2x128xi1>, vector<2x128xf32>
    %185 = arith.truncf %184 : vector<2x128xf32> to vector<2x128xbf16>
    %cst_85 = arith.constant 0.000000e+00 : f32
    %186 = vector.broadcast %cst_85 : f32 to vector<2x128xf32>
    %187 = arith.select %181, %186, %176 : vector<2x128xi1>, vector<2x128xf32>
    %cst_86 = arith.constant dense<0.000000e+00> : vector<2x128xf32>
    %188 = tpu.matmul %164, %126, %cst_86 {dimension_numbers = #tpu.dot_dimension_numbers<[1], [0], [0], [1], [0, 0, 1, 1], [], []>} : vector<2x128xbf16>, vector<128x128xbf16>, vector<2x128xf32> -> vector<2x128xf32>
    %189 = vector.extract_strided_slice %125 {offsets = [4, 0], sizes = [2, 128], strides = [1, 1]} : vector<20x128xf32> to vector<2x128xf32>
    %190 = arith.addf %179, %189 : vector<2x128xf32>
    %191 = arith.addf %190, %188 : vector<2x128xf32>
    %cst_87 = arith.constant 0.000000e+00 : f32
    %192 = vector.broadcast %cst_87 : f32 to vector<2x128xf32>
    %193 = arith.subf %192, %187 : vector<2x128xf32>
    %194 = arith.addf %193, %191 : vector<2x128xf32>
    %cst_88 = arith.constant 1.000000e-01 : f32
    %195 = vector.broadcast %cst_88 : f32 to vector<2x128xf32>
    %196 = arith.mulf %195, %194 : vector<2x128xf32>
    %197 = arith.addf %187, %196 : vector<2x128xf32>
    %cst_89 = arith.constant 2.000000e-01 : f32
    %198 = vector.broadcast %cst_89 : f32 to vector<2x128xf32>
    %199 = arith.mulf %198, %191 : vector<2x128xf32>
    %200 = arith.subf %191, %199 : vector<2x128xf32>
    %cst_90 = arith.constant 1.000000e+00 : f32
    %201 = vector.broadcast %cst_90 : f32 to vector<2x128xf32>
    %202 = arith.cmpf ogt, %197, %201 : vector<2x128xf32>
    %cst_91 = arith.constant 1.000000e+00 : f32
    %cst_92 = arith.constant 0.000000e+00 : f32
    %203 = vector.broadcast %cst_91 : f32 to vector<2x128xf32>
    %204 = vector.broadcast %cst_92 : f32 to vector<2x128xf32>
    %205 = arith.select %202, %203, %204 : vector<2x128xi1>, vector<2x128xf32>
    %206 = arith.truncf %205 : vector<2x128xf32> to vector<2x128xbf16>
    %cst_93 = arith.constant 0.000000e+00 : f32
    %207 = vector.broadcast %cst_93 : f32 to vector<2x128xf32>
    %208 = arith.select %202, %207, %197 : vector<2x128xi1>, vector<2x128xf32>
    %cst_94 = arith.constant dense<0.000000e+00> : vector<2x128xf32>
    %209 = tpu.matmul %185, %126, %cst_94 {dimension_numbers = #tpu.dot_dimension_numbers<[1], [0], [0], [1], [0, 0, 1, 1], [], []>} : vector<2x128xbf16>, vector<128x128xbf16>, vector<2x128xf32> -> vector<2x128xf32>
    %210 = vector.extract_strided_slice %125 {offsets = [6, 0], sizes = [2, 128], strides = [1, 1]} : vector<20x128xf32> to vector<2x128xf32>
    %211 = arith.addf %200, %210 : vector<2x128xf32>
    %212 = arith.addf %211, %209 : vector<2x128xf32>
    %cst_95 = arith.constant 0.000000e+00 : f32
    %213 = vector.broadcast %cst_95 : f32 to vector<2x128xf32>
    %214 = arith.subf %213, %208 : vector<2x128xf32>
    %215 = arith.addf %214, %212 : vector<2x128xf32>
    %cst_96 = arith.constant 1.000000e-01 : f32
    %216 = vector.broadcast %cst_96 : f32 to vector<2x128xf32>
    %217 = arith.mulf %216, %215 : vector<2x128xf32>
    %218 = arith.addf %208, %217 : vector<2x128xf32>
    %cst_97 = arith.constant 2.000000e-01 : f32
    %219 = vector.broadcast %cst_97 : f32 to vector<2x128xf32>
    %220 = arith.mulf %219, %212 : vector<2x128xf32>
    %221 = arith.subf %212, %220 : vector<2x128xf32>
    %cst_98 = arith.constant 1.000000e+00 : f32
    %222 = vector.broadcast %cst_98 : f32 to vector<2x128xf32>
    %223 = arith.cmpf ogt, %218, %222 : vector<2x128xf32>
    %cst_99 = arith.constant 1.000000e+00 : f32
    %cst_100 = arith.constant 0.000000e+00 : f32
    %224 = vector.broadcast %cst_99 : f32 to vector<2x128xf32>
    %225 = vector.broadcast %cst_100 : f32 to vector<2x128xf32>
    %226 = arith.select %223, %224, %225 : vector<2x128xi1>, vector<2x128xf32>
    %227 = arith.truncf %226 : vector<2x128xf32> to vector<2x128xbf16>
    %cst_101 = arith.constant 0.000000e+00 : f32
    %228 = vector.broadcast %cst_101 : f32 to vector<2x128xf32>
    %229 = arith.select %223, %228, %218 : vector<2x128xi1>, vector<2x128xf32>
    %cst_102 = arith.constant dense<0.000000e+00> : vector<2x128xf32>
    %230 = tpu.matmul %206, %126, %cst_102 {dimension_numbers = #tpu.dot_dimension_numbers<[1], [0], [0], [1], [0, 0, 1, 1], [], []>} : vector<2x128xbf16>, vector<128x128xbf16>, vector<2x128xf32> -> vector<2x128xf32>
    %231 = vector.extract_strided_slice %125 {offsets = [8, 0], sizes = [2, 128], strides = [1, 1]} : vector<20x128xf32> to vector<2x128xf32>
    %232 = arith.addf %221, %231 : vector<2x128xf32>
    %233 = arith.addf %232, %230 : vector<2x128xf32>
    %cst_103 = arith.constant 0.000000e+00 : f32
    %234 = vector.broadcast %cst_103 : f32 to vector<2x128xf32>
    %235 = arith.subf %234, %229 : vector<2x128xf32>
    %236 = arith.addf %235, %233 : vector<2x128xf32>
    %cst_104 = arith.constant 1.000000e-01 : f32
    %237 = vector.broadcast %cst_104 : f32 to vector<2x128xf32>
    %238 = arith.mulf %237, %236 : vector<2x128xf32>
    %239 = arith.addf %229, %238 : vector<2x128xf32>
    %cst_105 = arith.constant 2.000000e-01 : f32
    %240 = vector.broadcast %cst_105 : f32 to vector<2x128xf32>
    %241 = arith.mulf %240, %233 : vector<2x128xf32>
    %242 = arith.subf %233, %241 : vector<2x128xf32>
    %cst_106 = arith.constant 1.000000e+00 : f32
    %243 = vector.broadcast %cst_106 : f32 to vector<2x128xf32>
    %244 = arith.cmpf ogt, %239, %243 : vector<2x128xf32>
    %cst_107 = arith.constant 1.000000e+00 : f32
    %cst_108 = arith.constant 0.000000e+00 : f32
    %245 = vector.broadcast %cst_107 : f32 to vector<2x128xf32>
    %246 = vector.broadcast %cst_108 : f32 to vector<2x128xf32>
    %247 = arith.select %244, %245, %246 : vector<2x128xi1>, vector<2x128xf32>
    %248 = arith.truncf %247 : vector<2x128xf32> to vector<2x128xbf16>
    %cst_109 = arith.constant 0.000000e+00 : f32
    %249 = vector.broadcast %cst_109 : f32 to vector<2x128xf32>
    %250 = arith.select %244, %249, %239 : vector<2x128xi1>, vector<2x128xf32>
    %cst_110 = arith.constant dense<0.000000e+00> : vector<2x128xf32>
    %251 = tpu.matmul %227, %126, %cst_110 {dimension_numbers = #tpu.dot_dimension_numbers<[1], [0], [0], [1], [0, 0, 1, 1], [], []>} : vector<2x128xbf16>, vector<128x128xbf16>, vector<2x128xf32> -> vector<2x128xf32>
    %252 = vector.extract_strided_slice %125 {offsets = [10, 0], sizes = [2, 128], strides = [1, 1]} : vector<20x128xf32> to vector<2x128xf32>
    %253 = arith.addf %242, %252 : vector<2x128xf32>
    %254 = arith.addf %253, %251 : vector<2x128xf32>
    %cst_111 = arith.constant 0.000000e+00 : f32
    %255 = vector.broadcast %cst_111 : f32 to vector<2x128xf32>
    %256 = arith.subf %255, %250 : vector<2x128xf32>
    %257 = arith.addf %256, %254 : vector<2x128xf32>
    %cst_112 = arith.constant 1.000000e-01 : f32
    %258 = vector.broadcast %cst_112 : f32 to vector<2x128xf32>
    %259 = arith.mulf %258, %257 : vector<2x128xf32>
    %260 = arith.addf %250, %259 : vector<2x128xf32>
    %cst_113 = arith.constant 2.000000e-01 : f32
    %261 = vector.broadcast %cst_113 : f32 to vector<2x128xf32>
    %262 = arith.mulf %261, %254 : vector<2x128xf32>
    %263 = arith.subf %254, %262 : vector<2x128xf32>
    %cst_114 = arith.constant 1.000000e+00 : f32
    %264 = vector.broadcast %cst_114 : f32 to vector<2x128xf32>
    %265 = arith.cmpf ogt, %260, %264 : vector<2x128xf32>
    %cst_115 = arith.constant 1.000000e+00 : f32
    %cst_116 = arith.constant 0.000000e+00 : f32
    %266 = vector.broadcast %cst_115 : f32 to vector<2x128xf32>
    %267 = vector.broadcast %cst_116 : f32 to vector<2x128xf32>
    %268 = arith.select %265, %266, %267 : vector<2x128xi1>, vector<2x128xf32>
    %269 = arith.truncf %268 : vector<2x128xf32> to vector<2x128xbf16>
    %cst_117 = arith.constant 0.000000e+00 : f32
    %270 = vector.broadcast %cst_117 : f32 to vector<2x128xf32>
    %271 = arith.select %265, %270, %260 : vector<2x128xi1>, vector<2x128xf32>
    %cst_118 = arith.constant dense<0.000000e+00> : vector<2x128xf32>
    %272 = tpu.matmul %248, %126, %cst_118 {dimension_numbers = #tpu.dot_dimension_numbers<[1], [0], [0], [1], [0, 0, 1, 1], [], []>} : vector<2x128xbf16>, vector<128x128xbf16>, vector<2x128xf32> -> vector<2x128xf32>
    %273 = vector.extract_strided_slice %125 {offsets = [12, 0], sizes = [2, 128], strides = [1, 1]} : vector<20x128xf32> to vector<2x128xf32>
    %274 = arith.addf %263, %273 : vector<2x128xf32>
    %275 = arith.addf %274, %272 : vector<2x128xf32>
    %cst_119 = arith.constant 0.000000e+00 : f32
    %276 = vector.broadcast %cst_119 : f32 to vector<2x128xf32>
    %277 = arith.subf %276, %271 : vector<2x128xf32>
    %278 = arith.addf %277, %275 : vector<2x128xf32>
    %cst_120 = arith.constant 1.000000e-01 : f32
    %279 = vector.broadcast %cst_120 : f32 to vector<2x128xf32>
    %280 = arith.mulf %279, %278 : vector<2x128xf32>
    %281 = arith.addf %271, %280 : vector<2x128xf32>
    %cst_121 = arith.constant 2.000000e-01 : f32
    %282 = vector.broadcast %cst_121 : f32 to vector<2x128xf32>
    %283 = arith.mulf %282, %275 : vector<2x128xf32>
    %284 = arith.subf %275, %283 : vector<2x128xf32>
    %cst_122 = arith.constant 1.000000e+00 : f32
    %285 = vector.broadcast %cst_122 : f32 to vector<2x128xf32>
    %286 = arith.cmpf ogt, %281, %285 : vector<2x128xf32>
    %cst_123 = arith.constant 1.000000e+00 : f32
    %cst_124 = arith.constant 0.000000e+00 : f32
    %287 = vector.broadcast %cst_123 : f32 to vector<2x128xf32>
    %288 = vector.broadcast %cst_124 : f32 to vector<2x128xf32>
    %289 = arith.select %286, %287, %288 : vector<2x128xi1>, vector<2x128xf32>
    %290 = arith.truncf %289 : vector<2x128xf32> to vector<2x128xbf16>
    %cst_125 = arith.constant 0.000000e+00 : f32
    %291 = vector.broadcast %cst_125 : f32 to vector<2x128xf32>
    %292 = arith.select %286, %291, %281 : vector<2x128xi1>, vector<2x128xf32>
    %cst_126 = arith.constant dense<0.000000e+00> : vector<2x128xf32>
    %293 = tpu.matmul %269, %126, %cst_126 {dimension_numbers = #tpu.dot_dimension_numbers<[1], [0], [0], [1], [0, 0, 1, 1], [], []>} : vector<2x128xbf16>, vector<128x128xbf16>, vector<2x128xf32> -> vector<2x128xf32>
    %294 = vector.extract_strided_slice %125 {offsets = [14, 0], sizes = [2, 128], strides = [1, 1]} : vector<20x128xf32> to vector<2x128xf32>
    %295 = arith.addf %284, %294 : vector<2x128xf32>
    %296 = arith.addf %295, %293 : vector<2x128xf32>
    %cst_127 = arith.constant 0.000000e+00 : f32
    %297 = vector.broadcast %cst_127 : f32 to vector<2x128xf32>
    %298 = arith.subf %297, %292 : vector<2x128xf32>
    %299 = arith.addf %298, %296 : vector<2x128xf32>
    %cst_128 = arith.constant 1.000000e-01 : f32
    %300 = vector.broadcast %cst_128 : f32 to vector<2x128xf32>
    %301 = arith.mulf %300, %299 : vector<2x128xf32>
    %302 = arith.addf %292, %301 : vector<2x128xf32>
    %cst_129 = arith.constant 2.000000e-01 : f32
    %303 = vector.broadcast %cst_129 : f32 to vector<2x128xf32>
    %304 = arith.mulf %303, %296 : vector<2x128xf32>
    %305 = arith.subf %296, %304 : vector<2x128xf32>
    %cst_130 = arith.constant 1.000000e+00 : f32
    %306 = vector.broadcast %cst_130 : f32 to vector<2x128xf32>
    %307 = arith.cmpf ogt, %302, %306 : vector<2x128xf32>
    %cst_131 = arith.constant 1.000000e+00 : f32
    %cst_132 = arith.constant 0.000000e+00 : f32
    %308 = vector.broadcast %cst_131 : f32 to vector<2x128xf32>
    %309 = vector.broadcast %cst_132 : f32 to vector<2x128xf32>
    %310 = arith.select %307, %308, %309 : vector<2x128xi1>, vector<2x128xf32>
    %311 = arith.truncf %310 : vector<2x128xf32> to vector<2x128xbf16>
    %cst_133 = arith.constant 0.000000e+00 : f32
    %312 = vector.broadcast %cst_133 : f32 to vector<2x128xf32>
    %313 = arith.select %307, %312, %302 : vector<2x128xi1>, vector<2x128xf32>
    %cst_134 = arith.constant dense<0.000000e+00> : vector<2x128xf32>
    %314 = tpu.matmul %290, %126, %cst_134 {dimension_numbers = #tpu.dot_dimension_numbers<[1], [0], [0], [1], [0, 0, 1, 1], [], []>} : vector<2x128xbf16>, vector<128x128xbf16>, vector<2x128xf32> -> vector<2x128xf32>
    %315 = vector.extract_strided_slice %125 {offsets = [16, 0], sizes = [2, 128], strides = [1, 1]} : vector<20x128xf32> to vector<2x128xf32>
    %316 = arith.addf %305, %315 : vector<2x128xf32>
    %317 = arith.addf %316, %314 : vector<2x128xf32>
    %cst_135 = arith.constant 0.000000e+00 : f32
    %318 = vector.broadcast %cst_135 : f32 to vector<2x128xf32>
    %319 = arith.subf %318, %313 : vector<2x128xf32>
    %320 = arith.addf %319, %317 : vector<2x128xf32>
    %cst_136 = arith.constant 1.000000e-01 : f32
    %321 = vector.broadcast %cst_136 : f32 to vector<2x128xf32>
    %322 = arith.mulf %321, %320 : vector<2x128xf32>
    %323 = arith.addf %313, %322 : vector<2x128xf32>
    %cst_137 = arith.constant 1.000000e+00 : f32
    %324 = vector.broadcast %cst_137 : f32 to vector<2x128xf32>
    %325 = arith.cmpf ogt, %323, %324 : vector<2x128xf32>
    %cst_138 = arith.constant 1.000000e+00 : f32
    %cst_139 = arith.constant 0.000000e+00 : f32
    %326 = vector.broadcast %cst_138 : f32 to vector<2x128xf32>
    %327 = vector.broadcast %cst_139 : f32 to vector<2x128xf32>
    %328 = arith.select %325, %326, %327 : vector<2x128xi1>, vector<2x128xf32>
    %329 = arith.truncf %328 : vector<2x128xf32> to vector<2x128xbf16>
    %330 = tpu.concatenate %143, %164, %185, %206, %227, %248, %269, %290, %311, %329 in 0 : vector<2x128xbf16>, vector<2x128xbf16>, vector<2x128xbf16>, vector<2x128xbf16>, vector<2x128xbf16>, vector<2x128xbf16>, vector<2x128xbf16>, vector<2x128xbf16>, vector<2x128xbf16>, vector<2x128xbf16> -> vector<20x128xbf16>
    %c0_140 = arith.constant 0 : index
    %c0_141 = arith.constant 0 : index
    %331 = vector.load %arg4[%c0_140, %c0_141] : memref<128x128xbf16, #tpu.memory_space<vmem>>, vector<128x128xbf16>
    %cst_142 = arith.constant dense<0.000000e+00> : vector<20x128xf32>
    %332 = tpu.matmul %330, %331, %cst_142 {dimension_numbers = #tpu.dot_dimension_numbers<[1], [0], [0], [1], [0, 0, 1, 1], [], []>} : vector<20x128xbf16>, vector<128x128xbf16>, vector<20x128xf32> -> vector<20x128xf32>
    %cst_143 = arith.constant 0.000000e+00 : f32
    %333 = vector.broadcast %cst_143 : f32 to vector<2x128xf32>
    %cst_144 = arith.constant 0.000000e+00 : f32
    %334 = vector.broadcast %cst_144 : f32 to vector<2x128xf32>
    %cst_145 = arith.constant 0xFF800000 : f32
    %335 = vector.broadcast %cst_145 : f32 to vector<2x128xf32>
    %cst_146 = arith.constant 0.000000e+00 : f32
    %336 = vector.broadcast %cst_146 : f32 to vector<2x128xf32>
    %337 = arith.subf %336, %333 : vector<2x128xf32>
    %338 = arith.addf %337, %334 : vector<2x128xf32>
    %cst_147 = arith.constant 1.000000e-01 : f32
    %339 = vector.broadcast %cst_147 : f32 to vector<2x128xf32>
    %340 = arith.mulf %339, %338 : vector<2x128xf32>
    %341 = arith.addf %333, %340 : vector<2x128xf32>
    %cst_148 = arith.constant 2.000000e-01 : f32
    %342 = vector.broadcast %cst_148 : f32 to vector<2x128xf32>
    %343 = arith.mulf %342, %334 : vector<2x128xf32>
    %344 = arith.subf %334, %343 : vector<2x128xf32>
    %345 = vector.extract_strided_slice %332 {offsets = [0, 0], sizes = [2, 128], strides = [1, 1]} : vector<20x128xf32> to vector<2x128xf32>
    %346 = arith.addf %344, %345 : vector<2x128xf32>
    %347 = arith.maximumf %335, %341 : vector<2x128xf32>
    %cst_149 = arith.constant 0.000000e+00 : f32
    %348 = vector.broadcast %cst_149 : f32 to vector<2x128xf32>
    %349 = arith.subf %348, %341 : vector<2x128xf32>
    %350 = arith.addf %349, %346 : vector<2x128xf32>
    %cst_150 = arith.constant 1.000000e-01 : f32
    %351 = vector.broadcast %cst_150 : f32 to vector<2x128xf32>
    %352 = arith.mulf %351, %350 : vector<2x128xf32>
    %353 = arith.addf %341, %352 : vector<2x128xf32>
    %cst_151 = arith.constant 2.000000e-01 : f32
    %354 = vector.broadcast %cst_151 : f32 to vector<2x128xf32>
    %355 = arith.mulf %354, %346 : vector<2x128xf32>
    %356 = arith.subf %346, %355 : vector<2x128xf32>
    %357 = vector.extract_strided_slice %332 {offsets = [2, 0], sizes = [2, 128], strides = [1, 1]} : vector<20x128xf32> to vector<2x128xf32>
    %358 = arith.addf %356, %357 : vector<2x128xf32>
    %359 = arith.maximumf %347, %353 : vector<2x128xf32>
    %cst_152 = arith.constant 0.000000e+00 : f32
    %360 = vector.broadcast %cst_152 : f32 to vector<2x128xf32>
    %361 = arith.subf %360, %353 : vector<2x128xf32>
    %362 = arith.addf %361, %358 : vector<2x128xf32>
    %cst_153 = arith.constant 1.000000e-01 : f32
    %363 = vector.broadcast %cst_153 : f32 to vector<2x128xf32>
    %364 = arith.mulf %363, %362 : vector<2x128xf32>
    %365 = arith.addf %353, %364 : vector<2x128xf32>
    %cst_154 = arith.constant 2.000000e-01 : f32
    %366 = vector.broadcast %cst_154 : f32 to vector<2x128xf32>
    %367 = arith.mulf %366, %358 : vector<2x128xf32>
    %368 = arith.subf %358, %367 : vector<2x128xf32>
    %369 = vector.extract_strided_slice %332 {offsets = [4, 0], sizes = [2, 128], strides = [1, 1]} : vector<20x128xf32> to vector<2x128xf32>
    %370 = arith.addf %368, %369 : vector<2x128xf32>
    %371 = arith.maximumf %359, %365 : vector<2x128xf32>
    %cst_155 = arith.constant 0.000000e+00 : f32
    %372 = vector.broadcast %cst_155 : f32 to vector<2x128xf32>
    %373 = arith.subf %372, %365 : vector<2x128xf32>
    %374 = arith.addf %373, %370 : vector<2x128xf32>
    %cst_156 = arith.constant 1.000000e-01 : f32
    %375 = vector.broadcast %cst_156 : f32 to vector<2x128xf32>
    %376 = arith.mulf %375, %374 : vector<2x128xf32>
    %377 = arith.addf %365, %376 : vector<2x128xf32>
    %cst_157 = arith.constant 2.000000e-01 : f32
    %378 = vector.broadcast %cst_157 : f32 to vector<2x128xf32>
    %379 = arith.mulf %378, %370 : vector<2x128xf32>
    %380 = arith.subf %370, %379 : vector<2x128xf32>
    %381 = vector.extract_strided_slice %332 {offsets = [6, 0], sizes = [2, 128], strides = [1, 1]} : vector<20x128xf32> to vector<2x128xf32>
    %382 = arith.addf %380, %381 : vector<2x128xf32>
    %383 = arith.maximumf %371, %377 : vector<2x128xf32>
    %cst_158 = arith.constant 0.000000e+00 : f32
    %384 = vector.broadcast %cst_158 : f32 to vector<2x128xf32>
    %385 = arith.subf %384, %377 : vector<2x128xf32>
    %386 = arith.addf %385, %382 : vector<2x128xf32>
    %cst_159 = arith.constant 1.000000e-01 : f32
    %387 = vector.broadcast %cst_159 : f32 to vector<2x128xf32>
    %388 = arith.mulf %387, %386 : vector<2x128xf32>
    %389 = arith.addf %377, %388 : vector<2x128xf32>
    %cst_160 = arith.constant 2.000000e-01 : f32
    %390 = vector.broadcast %cst_160 : f32 to vector<2x128xf32>
    %391 = arith.mulf %390, %382 : vector<2x128xf32>
    %392 = arith.subf %382, %391 : vector<2x128xf32>
    %393 = vector.extract_strided_slice %332 {offsets = [8, 0], sizes = [2, 128], strides = [1, 1]} : vector<20x128xf32> to vector<2x128xf32>
    %394 = arith.addf %392, %393 : vector<2x128xf32>
    %395 = arith.maximumf %383, %389 : vector<2x128xf32>
    %cst_161 = arith.constant 0.000000e+00 : f32
    %396 = vector.broadcast %cst_161 : f32 to vector<2x128xf32>
    %397 = arith.subf %396, %389 : vector<2x128xf32>
    %398 = arith.addf %397, %394 : vector<2x128xf32>
    %cst_162 = arith.constant 1.000000e-01 : f32
    %399 = vector.broadcast %cst_162 : f32 to vector<2x128xf32>
    %400 = arith.mulf %399, %398 : vector<2x128xf32>
    %401 = arith.addf %389, %400 : vector<2x128xf32>
    %cst_163 = arith.constant 2.000000e-01 : f32
    %402 = vector.broadcast %cst_163 : f32 to vector<2x128xf32>
    %403 = arith.mulf %402, %394 : vector<2x128xf32>
    %404 = arith.subf %394, %403 : vector<2x128xf32>
    %405 = vector.extract_strided_slice %332 {offsets = [10, 0], sizes = [2, 128], strides = [1, 1]} : vector<20x128xf32> to vector<2x128xf32>
    %406 = arith.addf %404, %405 : vector<2x128xf32>
    %407 = arith.maximumf %395, %401 : vector<2x128xf32>
    %cst_164 = arith.constant 0.000000e+00 : f32
    %408 = vector.broadcast %cst_164 : f32 to vector<2x128xf32>
    %409 = arith.subf %408, %401 : vector<2x128xf32>
    %410 = arith.addf %409, %406 : vector<2x128xf32>
    %cst_165 = arith.constant 1.000000e-01 : f32
    %411 = vector.broadcast %cst_165 : f32 to vector<2x128xf32>
    %412 = arith.mulf %411, %410 : vector<2x128xf32>
    %413 = arith.addf %401, %412 : vector<2x128xf32>
    %cst_166 = arith.constant 2.000000e-01 : f32
    %414 = vector.broadcast %cst_166 : f32 to vector<2x128xf32>
    %415 = arith.mulf %414, %406 : vector<2x128xf32>
    %416 = arith.subf %406, %415 : vector<2x128xf32>
    %417 = vector.extract_strided_slice %332 {offsets = [12, 0], sizes = [2, 128], strides = [1, 1]} : vector<20x128xf32> to vector<2x128xf32>
    %418 = arith.addf %416, %417 : vector<2x128xf32>
    %419 = arith.maximumf %407, %413 : vector<2x128xf32>
    %cst_167 = arith.constant 0.000000e+00 : f32
    %420 = vector.broadcast %cst_167 : f32 to vector<2x128xf32>
    %421 = arith.subf %420, %413 : vector<2x128xf32>
    %422 = arith.addf %421, %418 : vector<2x128xf32>
    %cst_168 = arith.constant 1.000000e-01 : f32
    %423 = vector.broadcast %cst_168 : f32 to vector<2x128xf32>
    %424 = arith.mulf %423, %422 : vector<2x128xf32>
    %425 = arith.addf %413, %424 : vector<2x128xf32>
    %cst_169 = arith.constant 2.000000e-01 : f32
    %426 = vector.broadcast %cst_169 : f32 to vector<2x128xf32>
    %427 = arith.mulf %426, %418 : vector<2x128xf32>
    %428 = arith.subf %418, %427 : vector<2x128xf32>
    %429 = vector.extract_strided_slice %332 {offsets = [14, 0], sizes = [2, 128], strides = [1, 1]} : vector<20x128xf32> to vector<2x128xf32>
    %430 = arith.addf %428, %429 : vector<2x128xf32>
    %431 = arith.maximumf %419, %425 : vector<2x128xf32>
    %cst_170 = arith.constant 0.000000e+00 : f32
    %432 = vector.broadcast %cst_170 : f32 to vector<2x128xf32>
    %433 = arith.subf %432, %425 : vector<2x128xf32>
    %434 = arith.addf %433, %430 : vector<2x128xf32>
    %cst_171 = arith.constant 1.000000e-01 : f32
    %435 = vector.broadcast %cst_171 : f32 to vector<2x128xf32>
    %436 = arith.mulf %435, %434 : vector<2x128xf32>
    %437 = arith.addf %425, %436 : vector<2x128xf32>
    %cst_172 = arith.constant 2.000000e-01 : f32
    %438 = vector.broadcast %cst_172 : f32 to vector<2x128xf32>
    %439 = arith.mulf %438, %430 : vector<2x128xf32>
    %440 = arith.subf %430, %439 : vector<2x128xf32>
    %441 = vector.extract_strided_slice %332 {offsets = [16, 0], sizes = [2, 128], strides = [1, 1]} : vector<20x128xf32> to vector<2x128xf32>
    %442 = arith.addf %440, %441 : vector<2x128xf32>
    %443 = arith.maximumf %431, %437 : vector<2x128xf32>
    %cst_173 = arith.constant 0.000000e+00 : f32
    %444 = vector.broadcast %cst_173 : f32 to vector<2x128xf32>
    %445 = arith.subf %444, %437 : vector<2x128xf32>
    %446 = arith.addf %445, %442 : vector<2x128xf32>
    %cst_174 = arith.constant 1.000000e-01 : f32
    %447 = vector.broadcast %cst_174 : f32 to vector<2x128xf32>
    %448 = arith.mulf %447, %446 : vector<2x128xf32>
    %449 = arith.addf %437, %448 : vector<2x128xf32>
    %450 = arith.maximumf %443, %449 : vector<2x128xf32>
    %451 = tpu.iota {dimensions = array<i32: 1>} : vector<2x128xi32>
    %c2_i32 = arith.constant 2 : i32
    %452 = vector.broadcast %c2_i32 : i32 to vector<2x128xi32>
    %453 = arith.cmpi slt, %451, %452 : vector<2x128xi32>
    %cst_175 = arith.constant 0xFF800000 : f32
    %454 = vector.broadcast %cst_175 : f32 to vector<2x128xf32>
    %455 = arith.select %453, %450, %454 : vector<2x128xi1>, vector<2x128xf32>
    %cst_176 = arith.constant dense<0xFF800000> : vector<2xf32>
    %456 = vector.multi_reduction <maximumf>, %455, %cst_176 [1] : vector<2x128xf32> to vector<2xf32>
    %457 = vector.shape_cast %456 : vector<2xf32> to vector<2x1xf32>
    %458 = vector.broadcast %457 : vector<2x1xf32> to vector<2x128xf32>
    %459 = arith.subf %455, %458 : vector<2x128xf32>
    %460 = math.exp %459 : vector<2x128xf32>
    %cst_177 = arith.constant 0.000000e+00 : f32
    %461 = vector.broadcast %cst_177 : f32 to vector<2x128xf32>
    %462 = arith.select %453, %460, %461 : vector<2x128xi1>, vector<2x128xf32>
    %cst_178 = arith.constant dense<0.000000e+00> : vector<2xf32>
    %463 = vector.multi_reduction <add>, %462, %cst_178 [1] : vector<2x128xf32> to vector<2xf32>
    %464 = vector.shape_cast %463 : vector<2xf32> to vector<2x1xf32>
    %465 = vector.broadcast %464 : vector<2x1xf32> to vector<2x128xf32>
    %466 = arith.divf %462, %465 : vector<2x128xf32>
    %c0_179 = arith.constant 0 : index
    %c0_180 = arith.constant 0 : index
    %467 = vector.load %arg5[%c0_179, %c0_180] : memref<2x128xf32, #tpu.memory_space<vmem>>, vector<2x128xf32>
    tpu.vector_store %arg5[%c0_179, %c0_180], %466 {strides = array<i32>} : memref<2x128xf32, #tpu.memory_space<vmem>>, vector<2x128xf32>,
    return
  }
  func.func @transform_0(%arg0: i32) -> (i32, i32) {
    %c0_i32 = arith.constant 0 : i32
    %c0_i32_0 = arith.constant 0 : i32
    return %arg0, %c0_i32 : i32, i32
  }
  func.func @transform_1(%arg0: i32) -> (i32, i32) {
    %c0_i32 = arith.constant 0 : i32
    %c0_i32_0 = arith.constant 0 : i32
    %c0_i32_1 = arith.constant 0 : i32
    return %c0_i32, %c0_i32_0 : i32, i32
  }
  func.func @transform_2(%arg0: i32) -> (i32, i32) {
    %c0_i32 = arith.constant 0 : i32
    %c0_i32_0 = arith.constant 0 : i32
    %c0_i32_1 = arith.constant 0 : i32
    return %c0_i32, %c0_i32_0 : i32, i32
  }
  func.func @transform_3(%arg0: i32) -> (i32, i32) {
    %c0_i32 = arith.constant 0 : i32
    %c0_i32_0 = arith.constant 0 : i32
    %c0_i32_1 = arith.constant 0 : i32
    return %c0_i32, %c0_i32_0 : i32, i32
  }
  func.func @transform_4(%arg0: i32) -> (i32, i32) {
    %c0_i32 = arith.constant 0 : i32
    %c0_i32_0 = arith.constant 0 : i32
    return %arg0, %c0_i32 : i32, i32
  }
}

</mosaic_0001>

<llo_original>
// kernel: tpu_custom_call.1
$region0: #{tpu_custom_call.1}
  #allocation0 [shape = 'u32[]', space=smem, size = 0x4, offset = 0x4, fixed_abs, tag = 'smem constant byte address 0x4 - core index']
  #allocation1 [shape = 'u32[144,128]{1,0:T(1,128)}', space=vmem, size = 0x12000, scoped, tag = 'internal scratch']
  %s0 = inlined_call_operand.hbm [shape: f32[2,4], index: 0, kind: input, shape index: {}]
  %s1 = inlined_call_operand.hbm [shape: bf16[8,128], index: 1, kind: input, shape index: {}]
  %s2 = inlined_call_operand.hbm [shape: bf16[128,128], index: 2, kind: input, shape index: {}]
  %s3 = inlined_call_operand.hbm [shape: bf16[128,128], index: 3, kind: input, shape index: {}]
  %s4 = inlined_call_operand.hbm [shape: f32[2,128], index: 4, kind: output, shape index: {}]
  %s5 = sld [smem:[#allocation0]]
  $region42: #{tpu_custom_call.1} parent=0
    _
  %s7 = ssub.s32 1, %s5
  %s8 = scalar_select 0, %s7, %s5
  $region1: #{tpu_custom_call.1} parent=0
    #allocation2 [shape = 'u8[1024]{0}', space=vmem, size = 0x400, scoped, tag = 'input window, operand 0, single buffered']
    #allocation3 [shape = 's32[1]{0}', space=sflag, size = 0x4, scoped, tag = 'scoped memory for tpu_custom_call.1']
    #allocation4 [shape = 's32[1]{0}', space=sflag, size = 0x4, scoped, tag = 'scoped memory for tpu_custom_call.1']
    #allocation5 [shape = 'u8[2048]{0}', space=vmem, size = 0x800, scoped, tag = 'input window, operand 1, single buffered']
    #allocation6 [shape = 's32[1]{0}', space=sflag, size = 0x4, scoped, tag = 'scoped memory for tpu_custom_call.1']
    #allocation7 [shape = 'u8[32768]{0}', space=vmem, size = 0x8000, scoped, tag = 'input window, operand 2, single buffered']
    #allocation8 [shape = 'u8[32768]{0}', space=vmem, size = 0x8000, scoped, tag = 'input window, operand 3, single buffered']
    #allocation9 [shape = 's32[1]{0}', space=sflag, size = 0x4, scoped, tag = 'scoped memory for tpu_custom_call.1']
    #allocation10 [shape = 'u8[1024]{0}', space=vmem, size = 0x400, scoped, tag = 'output window, operand 0, single buffered']
    %9 = vsyncpa [#allocation3], 0
    %10 = vsyncpa [#allocation6], 0
    %11 = vsyncpa [#allocation9], 0
    %12 = vsyncpa [#allocation4], 0
    // Predicated region
    $region2: #{tpu_custom_call.1} parent=1 // pred_check
      _
    $region3: #{tpu_custom_call.1} parent=1 // pred_check_branch
      %14 = sbr.rel (0) target = $region5
    $region4: #{tpu_custom_call.1} parent=1 // pred_region
      %s16 = ssub.s32 32, 32
      %17 = vsyncadd [#allocation3], %s16
      %s19 = sshll.u32 [#allocation2], 4
      %s20 = int_to_ptr.vmem [resolvable:$true] %s19
      %22 = dma.hbm_to_vmem [thread:$0]  %s0, 32, %s20, [#allocation3]
    $region5: #{tpu_custom_call.1} parent=1 // pred_fallthru
      _
    // Predicated region
    $region6: #{tpu_custom_call.1} parent=1 // pred_check
      _
    $region7: #{tpu_custom_call.1} parent=1 // pred_check_branch
      %24 = sbr.rel (0) target = $region9
    $region8: #{tpu_custom_call.1} parent=1 // pred_region
      %s26 = ssub.s32 64, 64
      %27 = vsyncadd [#allocation6], %s26
      %s29 = sshll.u32 [#allocation5], 4
      %s30 = int_to_ptr.vmem [resolvable:$true] %s29
      %32 = dma.hbm_to_vmem [thread:$0]  %s1, 64, %s30, [#allocation6]
    $region9: #{tpu_custom_call.1} parent=1 // pred_fallthru
      _
    // Predicated region
    $region10: #{tpu_custom_call.1} parent=1 // pred_check
      _
    $region11: #{tpu_custom_call.1} parent=1 // pred_check_branch
      %34 = sbr.rel (0) target = $region13
    $region12: #{tpu_custom_call.1} parent=1 // pred_region
      %s36 = ssub.s32 1024, 1024
      %37 = vsyncadd [#allocation6], %s36
      %s38 = sshll.u32 [#allocation7], 4
      %s39 = int_to_ptr.vmem [resolvable:$true] %s38
      %44 = dma.hbm_to_vmem [thread:$0]  %s2, 1024, %s39, [#allocation6], 64, 64, 4
    $region13: #{tpu_custom_call.1} parent=1 // pred_fallthru
      _
    // Predicated region
    $region14: #{tpu_custom_call.1} parent=1 // pred_check
      _
    $region15: #{tpu_custom_call.1} parent=1 // pred_check_branch
      %46 = sbr.rel (0) target = $region17
    $region16: #{tpu_custom_call.1} parent=1 // pred_region
      %s48 = ssub.s32 1024, 1024
      %49 = vsyncadd [#allocation9], %s48
      %s50 = sshll.u32 [#allocation8], 4
      %s51 = int_to_ptr.vmem [resolvable:$true] %s50
      %56 = dma.hbm_to_vmem [thread:$0]  %s3, 1024, %s51, [#allocation9], 64, 64, 4
    $region17: #{tpu_custom_call.1} parent=1 // pred_fallthru
      _
    // Predicated region
    $region18: #{tpu_custom_call.1} parent=1 // pred_check
      _
    $region19: #{tpu_custom_call.1} parent=1 // pred_check_branch
      %58 = sbr.rel (0) target = $region21
    $region20: #{tpu_custom_call.1} parent=1 // pred_region
      %59 = dma.done [#allocation3], 32
    $region21: #{tpu_custom_call.1} parent=1 // pred_fallthru
      _
    // Predicated region
    $region22: #{tpu_custom_call.1} parent=1 // pred_check
      _
    $region23: #{tpu_custom_call.1} parent=1 // pred_check_branch
      %61 = sbr.rel (0) target = $region25
    $region24: #{tpu_custom_call.1} parent=1 // pred_region
      %62 = dma.done [#allocation6], 64
    $region25: #{tpu_custom_call.1} parent=1 // pred_fallthru
      _
    // Predicated region
    $region26: #{tpu_custom_call.1} parent=1 // pred_check
      _
    $region27: #{tpu_custom_call.1} parent=1 // pred_check_branch
      %64 = sbr.rel (0) target = $region29
    $region28: #{tpu_custom_call.1} parent=1 // pred_region
      %65 = dma.done [#allocation6], 1024
    $region29: #{tpu_custom_call.1} parent=1 // pred_fallthru
      _
    // Predicated region
    $region30: #{tpu_custom_call.1} parent=1 // pred_check
      _
    $region31: #{tpu_custom_call.1} parent=1 // pred_check_branch
      %67 = sbr.rel (0) target = $region33
    $region32: #{tpu_custom_call.1} parent=1 // pred_region
      %68 = dma.done [#allocation9], 1024
    $region33: #{tpu_custom_call.1} parent=1 // pred_fallthru
      _
    %v70 = vld [vmem:[#allocation2] sm:$0x3]
    %v71 = vmul.f32 %v70, 50.0
    %v72 = vmax.f32 %v71, 0.0
    %v73 = vmul.f32 %v70, -50.0
    %v74 = vmax.f32 %v73, 0.0
    %76 = vrot.lane.b32.xlu0 %v74, 4
    %v77 = vpop.permute.xlu0 %76
    %vm79 = vcmask 31744
    %v80 = vsel %vm79, %v72, %v77
    %v81 = vadd.f32 %v80, 0.0
    %v82 = vmul.f32 %v81, 0.1
    %v83 = vadd.f32 %v82, 0.0
    %vm84 = vcmp.gt.f32.partialorder %v83, 1.0
    %v85 = vsel %vm84, 1.0, 0.0
    %v86 = vpack.c.bf16 %v85, %v85
    %v87 = vsel %vm84, 0.0, %v83
    %v88 = vmul.f32 %v87, 0.9
    %v89 = vadd.f32 %v88, %v82
    %vm90 = vcmp.gt.f32.partialorder %v89, 1.0
    %v91 = vsel %vm90, 1.0, 0.0
    %v92 = vpack.c.bf16 %v91, %v91
    %v93 = vsel %vm90, 0.0, %v89
    %v94 = vmul.f32 %v93, 0.9
    %v95 = vadd.f32 %v94, %v82
    %vm96 = vcmp.gt.f32.partialorder %v95, 1.0
    %v97 = vsel %vm96, 1.0, 0.0
    %v98 = vpack.c.bf16 %v97, %v97
    %v99 = vsel %vm96, 0.0, %v95
    %v100 = vmul.f32 %v99, 0.9
    %v101 = vadd.f32 %v100, %v82
    %vm102 = vcmp.gt.f32.partialorder %v101, 1.0
    %v103 = vsel %vm102, 1.0, 0.0
    %v104 = vpack.c.bf16 %v103, %v103
    %v105 = vsel %vm102, 0.0, %v101
    %v106 = vmul.f32 %v105, 0.9
    %v107 = vadd.f32 %v106, %v82
    %vm108 = vcmp.gt.f32.partialorder %v107, 1.0
    %v109 = vsel %vm108, 1.0, 0.0
    %v110 = vpack.c.bf16 %v109, %v109
    %v111 = vsel %vm108, 0.0, %v107
    %v112 = vmul.f32 %v111, 0.9
    %v113 = vadd.f32 %v112, %v82
    %vm114 = vcmp.gt.f32.partialorder %v113, 1.0
    %v115 = vsel %vm114, 1.0, 0.0
    %v116 = vpack.c.bf16 %v115, %v115
    %v117 = vsel %vm114, 0.0, %v113
    %v118 = vmul.f32 %v117, 0.9
    %v119 = vadd.f32 %v118, %v82
    %vm120 = vcmp.gt.f32.partialorder %v119, 1.0
    %v121 = vsel %vm120, 1.0, 0.0
    %v122 = vpack.c.bf16 %v121, %v121
    %v123 = vsel %vm120, 0.0, %v119
    %v124 = vmul.f32 %v123, 0.9
    %v125 = vadd.f32 %v124, %v82
    %vm126 = vcmp.gt.f32.partialorder %v125, 1.0
    %v127 = vsel %vm126, 1.0, 0.0
    %v128 = vpack.c.bf16 %v127, %v127
    %v129 = vsel %vm126, 0.0, %v125
    %v130 = vmul.f32 %v129, 0.9
    %v131 = vadd.f32 %v130, %v82
    %vm132 = vcmp.gt.f32.partialorder %v131, 1.0
    %v133 = vsel %vm132, 1.0, 0.0
    %v134 = vpack.c.bf16 %v133, %v133
    %v135 = vsel %vm132, 0.0, %v131
    %v136 = vmul.f32 %v135, 0.9
    %v137 = vadd.f32 %v136, %v82
    %vm138 = vcmp.gt.f32.partialorder %v137, 1.0
    %v139 = vsel %vm138, 1.0, 0.0
    %v140 = vpack.c.bf16 %v139, %v139
    %v142 = vrot.slane %v92, 7
    %v144 = vrot.slane %v98, 6
    %v146 = vrot.slane %v104, 5
    %v148 = vrot.slane %v110, 4
    %v150 = vrot.slane %v116, 3
    %v152 = vrot.slane %v122, 2
    %v154 = vrot.slane %v128, 1
    %v156 = vrot.slane %v140, 7
    %vm157 = vcmask 1040384
    %v160 = vsel %vm157, %v86, %v142
    %vm161 = vcmask 1041408
    %v163 = vsel %vm161, %v160, %v144
    %vm164 = vcmask 1042432
    %v166 = vsel %vm164, %v163, %v146
    %vm167 = vcmask 1043456
    %v169 = vsel %vm167, %v166, %v148
    %vm170 = vcmask 1044480
    %v172 = vsel %vm170, %v169, %v150
    %vm173 = vcmask 1045504
    %v175 = vsel %vm173, %v172, %v152
    %vm176 = vcmask 1046528
    %v178 = vsel %vm176, %v175, %v154
    %v181 = vsel %vm157, %v134, %v156
    %v182 = vld [vmem:[#allocation5] sm:$0xf]
    %vm183 = vcmask 64512
    %v184 = vsel %vm183, %v178, 0
    %v186 = vsel %vm183, %v181, 0
    %v189 = vsel %vm167, %v182, 0
    %191 = vmatprep.subr.bf16.mxu0 0
    %192 = vmatpush1.bf16.msra.mxu0 0
    %193 = vmatprep.subr.bf16.mxu0 0
    %194 = vmatpush1.bf16.msra.mxu0 0
    %195 = vmatprep.subr.bf16.mxu0 0
    %196 = vmatpush1.bf16.msra.mxu0 0
    %197 = vmatprep.subr.bf16.mxu0 0
    %198 = vmatpush1.bf16.msra.mxu0 0
    %199 = vmatprep.subr.bf16.mxu0 0
    %200 = vmatpush1.bf16.msra.mxu0 0
    %201 = vmatprep.subr.bf16.mxu0 0
    %202 = vmatpush1.bf16.msra.mxu0 0
    %203 = vmatprep.subr.bf16.mxu0 0
    %204 = vmatpush1.bf16.msra.mxu0 0
    %205 = vmatprep.subr.bf16.mxu0 0
    %206 = vmatpush1.bf16.msra.mxu0 %v189
    %207 = vmatprep.subr.bf16.mxu0 0
    %208 = vmatpush2.bf16.msra.mxu0 0
    %209 = vmatprep.subr.bf16.mxu0 0
    %210 = vmatpush2.bf16.msra.mxu0 0
    %211 = vmatprep.subr.bf16.mxu0 0
    %212 = vmatpush2.bf16.msra.mxu0 0
    %213 = vmatprep.subr.bf16.mxu0 0
    %214 = vmatpush2.bf16.msra.mxu0 0
    %215 = vmatprep.subr.bf16.mxu0 0
    %216 = vmatpush2.bf16.msra.mxu0 0
    %217 = vmatprep.subr.bf16.mxu0 0
    %218 = vmatpush2.bf16.msra.mxu0 0
    %219 = vmatprep.subr.bf16.mxu0 0
    %220 = vmatpush2.bf16.msra.mxu0 0
    %221 = vmatprep.subr.bf16.mxu0 0
    %222 = vmatpush2.bf16.msra.mxu0 0
    %223 = vmatprep.mubr.bf16.mxu0 0
    %224 = vmatmul.mubr.bf16.gmra.mxu0 %v184
    %v225 = vpop.f32.mrf.mxu0
    %v226 = vadd.f32 0.0, %v225
    %v227 = vpop.f32.mrf.mxu0
    %v228 = vpop.f32.mrf.mxu0
    %v229 = vadd.f32 0.0, %v228
    %v230 = vpop.f32.mrf.mxu0
    %231 = vmatprep.mubr.bf16.mxu0 0
    %232 = vmatmul.mubr.bf16.gmra.mxu0 %v186
    %v233 = vpop.f32.mrf.mxu0
    %v234 = vadd.f32 0.0, %v233
    %v235 = vpop.f32.mrf.mxu0
    %v236 = vpop.f32.mrf.mxu0
    %v237 = vpop.f32.mrf.mxu0
    %238 = vdwg.mxu0
    %v239 = vld [vmem:[#allocation7] sm:$0xf]
    %v240 = vld [vmem:[#allocation7 + $0x4] sm:$0xf]
    %v241 = vld [vmem:[#allocation7 + $0x8] sm:$0xf]
    %v242 = vld [vmem:[#allocation7 + $0xc] sm:$0xf]
    %v243 = vld [vmem:[#allocation7 + $0x10] sm:$0xf]
    %v244 = vld [vmem:[#allocation7 + $0x14] sm:$0xf]
    %v245 = vld [vmem:[#allocation7 + $0x18] sm:$0xf]
    %v246 = vld [vmem:[#allocation7 + $0x1c] sm:$0xf]
    %v247 = vld [vmem:[#allocation7 + $0x20] sm:$0xf]
    %v248 = vld [vmem:[#allocation7 + $0x24] sm:$0xf]
    %v249 = vld [vmem:[#allocation7 + $0x28] sm:$0xf]
    %v250 = vld [vmem:[#allocation7 + $0x2c] sm:$0xf]
    %v251 = vld [vmem:[#allocation7 + $0x30] sm:$0xf]
    %v252 = vld [vmem:[#allocation7 + $0x34] sm:$0xf]
    %v253 = vld [vmem:[#allocation7 + $0x38] sm:$0xf]
    %v254 = vld [vmem:[#allocation7 + $0x3c] sm:$0xf]
    %vm255 = vcmp.gt.f32.partialorder 0.0, 1.0
    %v256 = vsel %vm255, 1.0, 0.0
    %v257 = vpack.c.bf16 %v256, %v256
    %v258 = vadd.f32 %v226, 0.0
    %v259 = vadd.f32 %v258, 0.0
    %v260 = vadd.f32 %v259, 0.0
    %v261 = vmul.f32 %v260, 0.1
    %v262 = vadd.f32 %v261, 0.0
    %v263 = vmul.f32 %v259, 0.2
    %v264 = vsub.f32 %v259, %v263
    %vm265 = vcmp.gt.f32.partialorder %v262, 1.0
    %v266 = vsel %vm265, 1.0, 0.0
    %v267 = vpack.c.bf16 %v266, %v266
    %v268 = vsel %vm265, 0.0, %v262
    %v285 = vunpack.c.l.b16 %v239
    %v286 = vunpack.c.l.b16 %v240
    %v287 = vunpack.c.l.b16 %v241
    %v288 = vunpack.c.l.b16 %v242
    %v289 = vunpack.c.l.b16 %v243
    %v290 = vunpack.c.l.b16 %v244
    %v291 = vunpack.c.l.b16 %v245
    %v292 = vunpack.c.l.b16 %v246
    %v293 = vunpack.c.l.b16 %v247
    %v294 = vunpack.c.l.b16 %v248
    %v295 = vunpack.c.l.b16 %v249
    %v296 = vunpack.c.l.b16 %v250
    %v297 = vunpack.c.l.b16 %v251
    %v298 = vunpack.c.l.b16 %v252
    %v299 = vunpack.c.l.b16 %v253
    %v300 = vunpack.c.l.b16 %v254
    %v301 = vpack.c.b16 %v286, %v285
    %v302 = vpack.c.b16 %v288, %v287
    %v303 = vpack.c.b16 %v290, %v289
    %v304 = vpack.c.b16 %v292, %v291
    %v305 = vpack.c.b16 %v294, %v293
    %v306 = vpack.c.b16 %v296, %v295
    %v307 = vpack.c.b16 %v298, %v297
    %v308 = vpack.c.b16 %v300, %v299
    %317 = vmatprep.subr.bf16.mxu0 0
    %318 = vmatpush1.bf16.msra.mxu0 %v308
    %319 = vmatprep.subr.bf16.mxu0 0
    %320 = vmatpush1.bf16.msra.mxu0 %v307
    %321 = vmatprep.subr.bf16.mxu0 0
    %322 = vmatpush1.bf16.msra.mxu0 %v306
    %323 = vmatprep.subr.bf16.mxu0 0
    %324 = vmatpush1.bf16.msra.mxu0 %v305
    %325 = vmatprep.subr.bf16.mxu0 0
    %326 = vmatpush1.bf16.msra.mxu0 %v304
    %327 = vmatprep.subr.bf16.mxu0 0
    %328 = vmatpush1.bf16.msra.mxu0 %v303
    %329 = vmatprep.subr.bf16.mxu0 0
    %330 = vmatpush1.bf16.msra.mxu0 %v302
    %331 = vmatprep.subr.bf16.mxu0 0
    %332 = vmatpush1.bf16.msra.mxu0 %v301
    %333 = vmatprep.subr.bf16.mxu0 0
    %334 = vmatpush2.bf16.msra.mxu0 0
    %335 = vmatprep.subr.bf16.mxu0 0
    %336 = vmatpush2.bf16.msra.mxu0 0
    %337 = vmatprep.subr.bf16.mxu0 0
    %338 = vmatpush2.bf16.msra.mxu0 0
    %339 = vmatprep.subr.bf16.mxu0 0
    %340 = vmatpush2.bf16.msra.mxu0 0
    %341 = vmatprep.subr.bf16.mxu0 0
    %342 = vmatpush2.bf16.msra.mxu0 0
    %343 = vmatprep.subr.bf16.mxu0 0
    %344 = vmatpush2.bf16.msra.mxu0 0
    %345 = vmatprep.subr.bf16.mxu0 0
    %346 = vmatpush2.bf16.msra.mxu0 0
    %347 = vmatprep.subr.bf16.mxu0 0
    %348 = vmatpush2.bf16.msra.mxu0 0
    %349 = vmatprep.mubr.bf16.mxu0 0
    %350 = vmatmul.mubr.bf16.gmra.mxu0 %v257
    %v351 = vpop.f32.mrf.mxu0
    %v352 = vadd.f32 0.0, %v351
    %v353 = vpop.f32.mrf.mxu0
    %v354 = vpop.f32.mrf.mxu0
    %v355 = vpop.f32.mrf.mxu0
    %356 = vdwg.mxu0
    %v358 = vrot.slane %v226, 2
    %v360 = vadd.f32 %v264, %v358
    %v361 = vadd.f32 %v360, %v352
    %v362 = vsub.f32 0.0, %v268
    %v363 = vadd.f32 %v362, %v361
    %v364 = vmul.f32 %v363, 0.1
    %v365 = vadd.f32 %v268, %v364
    %v366 = vmul.f32 %v361, 0.2
    %v367 = vsub.f32 %v361, %v366
    %vm368 = vcmp.gt.f32.partialorder %v365, 1.0
    %v369 = vsel %vm368, 1.0, 0.0
    %v370 = vpack.c.bf16 %v369, %v369
    %v371 = vsel %vm368, 0.0, %v365
    %372 = vmatprep.subr.bf16.mxu0 0
    %373 = vmatpush1.bf16.msra.mxu0 %v308
    %374 = vmatprep.subr.bf16.mxu0 0
    %375 = vmatpush1.bf16.msra.mxu0 %v307
    %376 = vmatprep.subr.bf16.mxu0 0
    %377 = vmatpush1.bf16.msra.mxu0 %v306
    %378 = vmatprep.subr.bf16.mxu0 0
    %379 = vmatpush1.bf16.msra.mxu0 %v305
    %380 = vmatprep.subr.bf16.mxu0 0
    %381 = vmatpush1.bf16.msra.mxu0 %v304
    %382 = vmatprep.subr.bf16.mxu0 0
    %383 = vmatpush1.bf16.msra.mxu0 %v303
    %384 = vmatprep.subr.bf16.mxu0 0
    %385 = vmatpush1.bf16.msra.mxu0 %v302
    %386 = vmatprep.subr.bf16.mxu0 0
    %387 = vmatpush1.bf16.msra.mxu0 %v301
    %388 = vmatprep.subr.bf16.mxu0 0
    %389 = vmatpush2.bf16.msra.mxu0 0
    %390 = vmatprep.subr.bf16.mxu0 0
    %391 = vmatpush2.bf16.msra.mxu0 0
    %392 = vmatprep.subr.bf16.mxu0 0
    %393 = vmatpush2.bf16.msra.mxu0 0
    %394 = vmatprep.subr.bf16.mxu0 0
    %395 = vmatpush2.bf16.msra.mxu0 0
    %396 = vmatprep.subr.bf16.mxu0 0
    %397 = vmatpush2.bf16.msra.mxu0 0
    %398 = vmatprep.subr.bf16.mxu0 0
    %399 = vmatpush2.bf16.msra.mxu0 0
    %400 = vmatprep.subr.bf16.mxu0 0
    %401 = vmatpush2.bf16.msra.mxu0 0
    %402 = vmatprep.subr.bf16.mxu0 0
    %403 = vmatpush2.bf16.msra.mxu0 0
    %404 = vmatprep.mubr.bf16.mxu0 0
    %405 = vmatmul.mubr.bf16.gmra.mxu0 %v267
    %v406 = vpop.f32.mrf.mxu0
    %v407 = vadd.f32 0.0, %v406
    %v408 = vpop.f32.mrf.mxu0
    %v409 = vpop.f32.mrf.mxu0
    %v410 = vpop.f32.mrf.mxu0
    %411 = vdwg.mxu0
    %v412 = vrot.slane %v226, 4
    %v414 = vadd.f32 %v367, %v412
    %v415 = vadd.f32 %v414, %v407
    %v416 = vsub.f32 0.0, %v371
    %v417 = vadd.f32 %v416, %v415
    %v418 = vmul.f32 %v417, 0.1
    %v419 = vadd.f32 %v371, %v418
    %v420 = vmul.f32 %v415, 0.2
    %v421 = vsub.f32 %v415, %v420
    %vm422 = vcmp.gt.f32.partialorder %v419, 1.0
    %v423 = vsel %vm422, 1.0, 0.0
    %v424 = vpack.c.bf16 %v423, %v423
    %v425 = vsel %vm422, 0.0, %v419
    %426 = vmatprep.subr.bf16.mxu0 0
    %427 = vmatpush1.bf16.msra.mxu0 %v308
    %428 = vmatprep.subr.bf16.mxu0 0
    %429 = vmatpush1.bf16.msra.mxu0 %v307
    %430 = vmatprep.subr.bf16.mxu0 0
    %431 = vmatpush1.bf16.msra.mxu0 %v306
    %432 = vmatprep.subr.bf16.mxu0 0
    %433 = vmatpush1.bf16.msra.mxu0 %v305
    %434 = vmatprep.subr.bf16.mxu0 0
    %435 = vmatpush1.bf16.msra.mxu0 %v304
    %436 = vmatprep.subr.bf16.mxu0 0
    %437 = vmatpush1.bf16.msra.mxu0 %v303
    %438 = vmatprep.subr.bf16.mxu0 0
    %439 = vmatpush1.bf16.msra.mxu0 %v302
    %440 = vmatprep.subr.bf16.mxu0 0
    %441 = vmatpush1.bf16.msra.mxu0 %v301
    %442 = vmatprep.subr.bf16.mxu0 0
    %443 = vmatpush2.bf16.msra.mxu0 0
    %444 = vmatprep.subr.bf16.mxu0 0
    %445 = vmatpush2.bf16.msra.mxu0 0
    %446 = vmatprep.subr.bf16.mxu0 0
    %447 = vmatpush2.bf16.msra.mxu0 0
    %448 = vmatprep.subr.bf16.mxu0 0
    %449 = vmatpush2.bf16.msra.mxu0 0
    %450 = vmatprep.subr.bf16.mxu0 0
    %451 = vmatpush2.bf16.msra.mxu0 0
    %452 = vmatprep.subr.bf16.mxu0 0
    %453 = vmatpush2.bf16.msra.mxu0 0
    %454 = vmatprep.subr.bf16.mxu0 0
    %455 = vmatpush2.bf16.msra.mxu0 0
    %456 = vmatprep.subr.bf16.mxu0 0
    %457 = vmatpush2.bf16.msra.mxu0 0
    %458 = vmatprep.mubr.bf16.mxu0 0
    %459 = vmatmul.mubr.bf16.gmra.mxu0 %v370
    %v460 = vpop.f32.mrf.mxu0
    %v461 = vadd.f32 0.0, %v460
    %v462 = vpop.f32.mrf.mxu0
    %v463 = vpop.f32.mrf.mxu0
    %v464 = vpop.f32.mrf.mxu0
    %465 = vdwg.mxu0
    %v466 = vrot.slane %v226, 6
    %v468 = vadd.f32 %v421, %v466
    %v469 = vadd.f32 %v468, %v461
    %v470 = vsub.f32 0.0, %v425
    %v471 = vadd.f32 %v470, %v469
    %v472 = vmul.f32 %v471, 0.1
    %v473 = vadd.f32 %v425, %v472
    %v474 = vmul.f32 %v469, 0.2
    %v475 = vsub.f32 %v469, %v474
    %vm476 = vcmp.gt.f32.partialorder %v473, 1.0
    %v477 = vsel %vm476, 1.0, 0.0
    %v478 = vpack.c.bf16 %v477, %v477
    %v479 = vsel %vm476, 0.0, %v473
    %480 = vmatprep.subr.bf16.mxu0 0
    %481 = vmatpush1.bf16.msra.mxu0 %v308
    %482 = vmatprep.subr.bf16.mxu0 0
    %483 = vmatpush1.bf16.msra.mxu0 %v307
    %484 = vmatprep.subr.bf16.mxu0 0
    %485 = vmatpush1.bf16.msra.mxu0 %v306
    %486 = vmatprep.subr.bf16.mxu0 0
    %487 = vmatpush1.bf16.msra.mxu0 %v305
    %488 = vmatprep.subr.bf16.mxu0 0
    %489 = vmatpush1.bf16.msra.mxu0 %v304
    %490 = vmatprep.subr.bf16.mxu0 0
    %491 = vmatpush1.bf16.msra.mxu0 %v303
    %492 = vmatprep.subr.bf16.mxu0 0
    %493 = vmatpush1.bf16.msra.mxu0 %v302
    %494 = vmatprep.subr.bf16.mxu0 0
    %495 = vmatpush1.bf16.msra.mxu0 %v301
    %496 = vmatprep.subr.bf16.mxu0 0
    %497 = vmatpush2.bf16.msra.mxu0 0
    %498 = vmatprep.subr.bf16.mxu0 0
    %499 = vmatpush2.bf16.msra.mxu0 0
    %500 = vmatprep.subr.bf16.mxu0 0
    %501 = vmatpush2.bf16.msra.mxu0 0
    %502 = vmatprep.subr.bf16.mxu0 0
    %503 = vmatpush2.bf16.msra.mxu0 0
    %504 = vmatprep.subr.bf16.mxu0 0
    %505 = vmatpush2.bf16.msra.mxu0 0
    %506 = vmatprep.subr.bf16.mxu0 0
    %507 = vmatpush2.bf16.msra.mxu0 0
    %508 = vmatprep.subr.bf16.mxu0 0
    %509 = vmatpush2.bf16.msra.mxu0 0
    %510 = vmatprep.subr.bf16.mxu0 0
    %511 = vmatpush2.bf16.msra.mxu0 0
    %512 = vmatprep.mubr.bf16.mxu0 0
    %513 = vmatmul.mubr.bf16.gmra.mxu0 %v424
    %v514 = vpop.f32.mrf.mxu0
    %v515 = vadd.f32 0.0, %v514
    %v516 = vpop.f32.mrf.mxu0
    %v517 = vpop.f32.mrf.mxu0
    %v518 = vpop.f32.mrf.mxu0
    %519 = vdwg.mxu0
    %v520 = vadd.f32 %v475, %v229
    %v521 = vadd.f32 %v520, %v515
    %v522 = vsub.f32 0.0, %v479
    %v523 = vadd.f32 %v522, %v521
    %v524 = vmul.f32 %v523, 0.1
    %v525 = vadd.f32 %v479, %v524
    %v526 = vmul.f32 %v521, 0.2
    %v527 = vsub.f32 %v521, %v526
    %vm528 = vcmp.gt.f32.partialorder %v525, 1.0
    %v529 = vsel %vm528, 1.0, 0.0
    %v530 = vpack.c.bf16 %v529, %v529
    %v531 = vsel %vm528, 0.0, %v525
    %532 = vmatprep.subr.bf16.mxu0 0
    %533 = vmatpush1.bf16.msra.mxu0 %v308
    %534 = vmatprep.subr.bf16.mxu0 0
    %535 = vmatpush1.bf16.msra.mxu0 %v307
    %536 = vmatprep.subr.bf16.mxu0 0
    %537 = vmatpush1.bf16.msra.mxu0 %v306
    %538 = vmatprep.subr.bf16.mxu0 0
    %539 = vmatpush1.bf16.msra.mxu0 %v305
    %540 = vmatprep.subr.bf16.mxu0 0
    %541 = vmatpush1.bf16.msra.mxu0 %v304
    %542 = vmatprep.subr.bf16.mxu0 0
    %543 = vmatpush1.bf16.msra.mxu0 %v303
    %544 = vmatprep.subr.bf16.mxu0 0
    %545 = vmatpush1.bf16.msra.mxu0 %v302
    %546 = vmatprep.subr.bf16.mxu0 0
    %547 = vmatpush1.bf16.msra.mxu0 %v301
    %548 = vmatprep.subr.bf16.mxu0 0
    %549 = vmatpush2.bf16.msra.mxu0 0
    %550 = vmatprep.subr.bf16.mxu0 0
    %551 = vmatpush2.bf16.msra.mxu0 0
    %552 = vmatprep.subr.bf16.mxu0 0
    %553 = vmatpush2.bf16.msra.mxu0 0
    %554 = vmatprep.subr.bf16.mxu0 0
    %555 = vmatpush2.bf16.msra.mxu0 0
    %556 = vmatprep.subr.bf16.mxu0 0
    %557 = vmatpush2.bf16.msra.mxu0 0
    %558 = vmatprep.subr.bf16.mxu0 0
    %559 = vmatpush2.bf16.msra.mxu0 0
    %560 = vmatprep.subr.bf16.mxu0 0
    %561 = vmatpush2.bf16.msra.mxu0 0
    %562 = vmatprep.subr.bf16.mxu0 0
    %563 = vmatpush2.bf16.msra.mxu0 0
    %564 = vmatprep.mubr.bf16.mxu0 0
    %565 = vmatmul.mubr.bf16.gmra.mxu0 %v478
    %v566 = vpop.f32.mrf.mxu0
    %v567 = vadd.f32 0.0, %v566
    %v568 = vpop.f32.mrf.mxu0
    %v569 = vpop.f32.mrf.mxu0
    %v570 = vpop.f32.mrf.mxu0
    %571 = vdwg.mxu0
    %v573 = vrot.slane %v229, 2
    %v575 = vadd.f32 %v527, %v573
    %v576 = vadd.f32 %v575, %v567
    %v577 = vsub.f32 0.0, %v531
    %v578 = vadd.f32 %v577, %v576
    %v579 = vmul.f32 %v578, 0.1
    %v580 = vadd.f32 %v531, %v579
    %v581 = vmul.f32 %v576, 0.2
    %v582 = vsub.f32 %v576, %v581
    %vm583 = vcmp.gt.f32.partialorder %v580, 1.0
    %v584 = vsel %vm583, 1.0, 0.0
    %v585 = vpack.c.bf16 %v584, %v584
    %v586 = vsel %vm583, 0.0, %v580
    %587 = vmatprep.subr.bf16.mxu0 0
    %588 = vmatpush1.bf16.msra.mxu0 %v308
    %589 = vmatprep.subr.bf16.mxu0 0
    %590 = vmatpush1.bf16.msra.mxu0 %v307
    %591 = vmatprep.subr.bf16.mxu0 0
    %592 = vmatpush1.bf16.msra.mxu0 %v306
    %593 = vmatprep.subr.bf16.mxu0 0
    %594 = vmatpush1.bf16.msra.mxu0 %v305
    %595 = vmatprep.subr.bf16.mxu0 0
    %596 = vmatpush1.bf16.msra.mxu0 %v304
    %597 = vmatprep.subr.bf16.mxu0 0
    %598 = vmatpush1.bf16.msra.mxu0 %v303
    %599 = vmatprep.subr.bf16.mxu0 0
    %600 = vmatpush1.bf16.msra.mxu0 %v302
    %601 = vmatprep.subr.bf16.mxu0 0
    %602 = vmatpush1.bf16.msra.mxu0 %v301
    %603 = vmatprep.subr.bf16.mxu0 0
    %604 = vmatpush2.bf16.msra.mxu0 0
    %605 = vmatprep.subr.bf16.mxu0 0
    %606 = vmatpush2.bf16.msra.mxu0 0
    %607 = vmatprep.subr.bf16.mxu0 0
    %608 = vmatpush2.bf16.msra.mxu0 0
    %609 = vmatprep.subr.bf16.mxu0 0
    %610 = vmatpush2.bf16.msra.mxu0 0
    %611 = vmatprep.subr.bf16.mxu0 0
    %612 = vmatpush2.bf16.msra.mxu0 0
    %613 = vmatprep.subr.bf16.mxu0 0
    %614 = vmatpush2.bf16.msra.mxu0 0
    %615 = vmatprep.subr.bf16.mxu0 0
    %616 = vmatpush2.bf16.msra.mxu0 0
    %617 = vmatprep.subr.bf16.mxu0 0
    %618 = vmatpush2.bf16.msra.mxu0 0
    %619 = vmatprep.mubr.bf16.mxu0 0
    %620 = vmatmul.mubr.bf16.gmra.mxu0 %v530
    %v621 = vpop.f32.mrf.mxu0
    %v622 = vadd.f32 0.0, %v621
    %v623 = vpop.f32.mrf.mxu0
    %v624 = vpop.f32.mrf.mxu0
    %v625 = vpop.f32.mrf.mxu0
    %626 = vdwg.mxu0
    %v627 = vrot.slane %v229, 4
    %v629 = vadd.f32 %v582, %v627
    %v630 = vadd.f32 %v629, %v622
    %v631 = vsub.f32 0.0, %v586
    %v632 = vadd.f32 %v631, %v630
    %v633 = vmul.f32 %v632, 0.1
    %v634 = vadd.f32 %v586, %v633
    %v635 = vmul.f32 %v630, 0.2
    %v636 = vsub.f32 %v630, %v635
    %vm637 = vcmp.gt.f32.partialorder %v634, 1.0
    %v638 = vsel %vm637, 1.0, 0.0
    %v639 = vpack.c.bf16 %v638, %v638
    %v640 = vsel %vm637, 0.0, %v634
    %641 = vmatprep.subr.bf16.mxu0 0
    %642 = vmatpush1.bf16.msra.mxu0 %v308
    %643 = vmatprep.subr.bf16.mxu0 0
    %644 = vmatpush1.bf16.msra.mxu0 %v307
    %645 = vmatprep.subr.bf16.mxu0 0
    %646 = vmatpush1.bf16.msra.mxu0 %v306
    %647 = vmatprep.subr.bf16.mxu0 0
    %648 = vmatpush1.bf16.msra.mxu0 %v305
    %649 = vmatprep.subr.bf16.mxu0 0
    %650 = vmatpush1.bf16.msra.mxu0 %v304
    %651 = vmatprep.subr.bf16.mxu0 0
    %652 = vmatpush1.bf16.msra.mxu0 %v303
    %653 = vmatprep.subr.bf16.mxu0 0
    %654 = vmatpush1.bf16.msra.mxu0 %v302
    %655 = vmatprep.subr.bf16.mxu0 0
    %656 = vmatpush1.bf16.msra.mxu0 %v301
    %657 = vmatprep.subr.bf16.mxu0 0
    %658 = vmatpush2.bf16.msra.mxu0 0
    %659 = vmatprep.subr.bf16.mxu0 0
    %660 = vmatpush2.bf16.msra.mxu0 0
    %661 = vmatprep.subr.bf16.mxu0 0
    %662 = vmatpush2.bf16.msra.mxu0 0
    %663 = vmatprep.subr.bf16.mxu0 0
    %664 = vmatpush2.bf16.msra.mxu0 0
    %665 = vmatprep.subr.bf16.mxu0 0
    %666 = vmatpush2.bf16.msra.mxu0 0
    %667 = vmatprep.subr.bf16.mxu0 0
    %668 = vmatpush2.bf16.msra.mxu0 0
    %669 = vmatprep.subr.bf16.mxu0 0
    %670 = vmatpush2.bf16.msra.mxu0 0
    %671 = vmatprep.subr.bf16.mxu0 0
    %672 = vmatpush2.bf16.msra.mxu0 0
    %673 = vmatprep.mubr.bf16.mxu0 0
    %674 = vmatmul.mubr.bf16.gmra.mxu0 %v585
    %v675 = vpop.f32.mrf.mxu0
    %v676 = vadd.f32 0.0, %v675
    %v677 = vpop.f32.mrf.mxu0
    %v678 = vpop.f32.mrf.mxu0
    %v679 = vpop.f32.mrf.mxu0
    %680 = vdwg.mxu0
    %v681 = vrot.slane %v229, 6
    %v683 = vadd.f32 %v636, %v681
    %v684 = vadd.f32 %v683, %v676
    %v685 = vsub.f32 0.0, %v640
    %v686 = vadd.f32 %v685, %v684
    %v687 = vmul.f32 %v686, 0.1
    %v688 = vadd.f32 %v640, %v687
    %v689 = vmul.f32 %v684, 0.2
    %v690 = vsub.f32 %v684, %v689
    %vm691 = vcmp.gt.f32.partialorder %v688, 1.0
    %v692 = vsel %vm691, 1.0, 0.0
    %v693 = vpack.c.bf16 %v692, %v692
    %v694 = vsel %vm691, 0.0, %v688
    %695 = vmatprep.subr.bf16.mxu0 0
    %696 = vmatpush1.bf16.msra.mxu0 %v308
    %697 = vmatprep.subr.bf16.mxu0 0
    %698 = vmatpush1.bf16.msra.mxu0 %v307
    %699 = vmatprep.subr.bf16.mxu0 0
    %700 = vmatpush1.bf16.msra.mxu0 %v306
    %701 = vmatprep.subr.bf16.mxu0 0
    %702 = vmatpush1.bf16.msra.mxu0 %v305
    %703 = vmatprep.subr.bf16.mxu0 0
    %704 = vmatpush1.bf16.msra.mxu0 %v304
    %705 = vmatprep.subr.bf16.mxu0 0
    %706 = vmatpush1.bf16.msra.mxu0 %v303
    %707 = vmatprep.subr.bf16.mxu0 0
    %708 = vmatpush1.bf16.msra.mxu0 %v302
    %709 = vmatprep.subr.bf16.mxu0 0
    %710 = vmatpush1.bf16.msra.mxu0 %v301
    %711 = vmatprep.subr.bf16.mxu0 0
    %712 = vmatpush2.bf16.msra.mxu0 0
    %713 = vmatprep.subr.bf16.mxu0 0
    %714 = vmatpush2.bf16.msra.mxu0 0
    %715 = vmatprep.subr.bf16.mxu0 0
    %716 = vmatpush2.bf16.msra.mxu0 0
    %717 = vmatprep.subr.bf16.mxu0 0
    %718 = vmatpush2.bf16.msra.mxu0 0
    %719 = vmatprep.subr.bf16.mxu0 0
    %720 = vmatpush2.bf16.msra.mxu0 0
    %721 = vmatprep.subr.bf16.mxu0 0
    %722 = vmatpush2.bf16.msra.mxu0 0
    %723 = vmatprep.subr.bf16.mxu0 0
    %724 = vmatpush2.bf16.msra.mxu0 0
    %725 = vmatprep.subr.bf16.mxu0 0
    %726 = vmatpush2.bf16.msra.mxu0 0
    %727 = vmatprep.mubr.bf16.mxu0 0
    %728 = vmatmul.mubr.bf16.gmra.mxu0 %v639
    %v729 = vpop.f32.mrf.mxu0
    %v730 = vadd.f32 0.0, %v729
    %v731 = vpop.f32.mrf.mxu0
    %v732 = vpop.f32.mrf.mxu0
    %v733 = vpop.f32.mrf.mxu0
    %734 = vdwg.mxu0
    %v735 = vadd.f32 %v690, %v234
    %v736 = vadd.f32 %v735, %v730
    %v737 = vsub.f32 0.0, %v694
    %v738 = vadd.f32 %v737, %v736
    %v739 = vmul.f32 %v738, 0.1
    %v740 = vadd.f32 %v694, %v739
    %vm741 = vcmp.gt.f32.partialorder %v740, 1.0
    %v742 = vsel %vm741, 1.0, 0.0
    %v743 = vpack.c.bf16 %v742, %v742
    %v745 = vrot.slane %v267, 7
    %v747 = vrot.slane %v370, 6
    %v749 = vrot.slane %v424, 5
    %v751 = vrot.slane %v478, 4
    %v753 = vrot.slane %v530, 3
    %v755 = vrot.slane %v585, 2
    %v757 = vrot.slane %v639, 1
    %v759 = vrot.slane %v743, 7
    %v762 = vsel %vm157, %v257, %v745
    %v764 = vsel %vm161, %v762, %v747
    %v766 = vsel %vm164, %v764, %v749
    %v768 = vsel %vm167, %v766, %v751
    %v770 = vsel %vm170, %v768, %v753
    %v772 = vsel %vm173, %v770, %v755
    %v774 = vsel %vm176, %v772, %v757
    %v778 = vsel %vm157, %v693, %v759
    %v780 = vld [vmem:[#allocation8] sm:$0xf]
    %v781 = vld [vmem:[#allocation8 + $0x4] sm:$0xf]
    %v782 = vld [vmem:[#allocation8 + $0x8] sm:$0xf]
    %v783 = vld [vmem:[#allocation8 + $0xc] sm:$0xf]
    %v784 = vld [vmem:[#allocation8 + $0x10] sm:$0xf]
    %v785 = vld [vmem:[#allocation8 + $0x14] sm:$0xf]
    %v786 = vld [vmem:[#allocation8 + $0x18] sm:$0xf]
    %v787 = vld [vmem:[#allocation8 + $0x1c] sm:$0xf]
    %v788 = vld [vmem:[#allocation8 + $0x20] sm:$0xf]
    %v789 = vld [vmem:[#allocation8 + $0x24] sm:$0xf]
    %v790 = vld [vmem:[#allocation8 + $0x28] sm:$0xf]
    %v791 = vld [vmem:[#allocation8 + $0x2c] sm:$0xf]
    %v792 = vld [vmem:[#allocation8 + $0x30] sm:$0xf]
    %v793 = vld [vmem:[#allocation8 + $0x34] sm:$0xf]
    %v794 = vld [vmem:[#allocation8 + $0x38] sm:$0xf]
    %v795 = vld [vmem:[#allocation8 + $0x3c] sm:$0xf]
    %v812 = vunpack.c.l.b16 %v780
    %v813 = vunpack.c.l.b16 %v781
    %v814 = vunpack.c.l.b16 %v782
    %v815 = vunpack.c.l.b16 %v783
    %v816 = vunpack.c.l.b16 %v784
    %v817 = vunpack.c.l.b16 %v785
    %v818 = vunpack.c.l.b16 %v786
    %v819 = vunpack.c.l.b16 %v787
    %v820 = vunpack.c.l.b16 %v788
    %v821 = vunpack.c.l.b16 %v789
    %v822 = vunpack.c.l.b16 %v790
    %v823 = vunpack.c.l.b16 %v791
    %v824 = vunpack.c.l.b16 %v792
    %v825 = vunpack.c.l.b16 %v793
    %v826 = vunpack.c.l.b16 %v794
    %v827 = vunpack.c.l.b16 %v795
    %v828 = vpack.c.b16 %v813, %v812
    %v829 = vpack.c.b16 %v815, %v814
    %v830 = vpack.c.b16 %v817, %v816
    %v831 = vpack.c.b16 %v819, %v818
    %v832 = vpack.c.b16 %v821, %v820
    %v833 = vpack.c.b16 %v823, %v822
    %v834 = vpack.c.b16 %v825, %v824
    %v835 = vpack.c.b16 %v827, %v826
    %844 = vmatprep.subr.bf16.mxu0 0
    %845 = vmatpush1.bf16.msra.mxu0 %v835
    %846 = vmatprep.subr.bf16.mxu0 0
    %847 = vmatpush1.bf16.msra.mxu0 %v834
    %848 = vmatprep.subr.bf16.mxu0 0
    %849 = vmatpush1.bf16.msra.mxu0 %v833
    %850 = vmatprep.subr.bf16.mxu0 0
    %851 = vmatpush1.bf16.msra.mxu0 %v832
    %852 = vmatprep.subr.bf16.mxu0 0
    %853 = vmatpush1.bf16.msra.mxu0 %v831
    %854 = vmatprep.subr.bf16.mxu0 0
    %855 = vmatpush1.bf16.msra.mxu0 %v830
    %856 = vmatprep.subr.bf16.mxu0 0
    %857 = vmatpush1.bf16.msra.mxu0 %v829
    %858 = vmatprep.subr.bf16.mxu0 0
    %859 = vmatpush1.bf16.msra.mxu0 %v828
    %860 = vmatprep.subr.bf16.mxu0 0
    %861 = vmatpush2.bf16.msra.mxu0 0
    %862 = vmatprep.subr.bf16.mxu0 0
    %863 = vmatpush2.bf16.msra.mxu0 0
    %864 = vmatprep.subr.bf16.mxu0 0
    %865 = vmatpush2.bf16.msra.mxu0 0
    %866 = vmatprep.subr.bf16.mxu0 0
    %867 = vmatpush2.bf16.msra.mxu0 0
    %868 = vmatprep.subr.bf16.mxu0 0
    %869 = vmatpush2.bf16.msra.mxu0 0
    %870 = vmatprep.subr.bf16.mxu0 0
    %871 = vmatpush2.bf16.msra.mxu0 0
    %872 = vmatprep.subr.bf16.mxu0 0
    %873 = vmatpush2.bf16.msra.mxu0 0
    %874 = vmatprep.subr.bf16.mxu0 0
    %875 = vmatpush2.bf16.msra.mxu0 0
    %876 = vmatprep.mubr.bf16.mxu0 0
    %877 = vmatmul.mubr.bf16.gmra.mxu0 %v774
    %v878 = vpop.f32.mrf.mxu0
    %v879 = vadd.f32 0.0, %v878
    %v880 = vpop.f32.mrf.mxu0
    %v881 = vpop.f32.mrf.mxu0
    %v882 = vadd.f32 0.0, %v881
    %v883 = vpop.f32.mrf.mxu0
    %884 = vmatprep.mubr.bf16.mxu0 0
    %885 = vmatmul.mubr.bf16.gmra.mxu0 %v778
    %v886 = vpop.f32.mrf.mxu0
    %v887 = vadd.f32 0.0, %v886
    %v888 = vpop.f32.mrf.mxu0
    %v889 = vpop.f32.mrf.mxu0
    %v890 = vpop.f32.mrf.mxu0
    %891 = vdwg.mxu0
    %v892 = vadd.f32 %v879, 0.0
    %v893 = vadd.f32 %v892, 0.0
    %v894 = vmul.f32 %v893, 0.1
    %v895 = vadd.f32 %v894, 0.0
    %v896 = vmul.f32 %v892, 0.2
    %v897 = vsub.f32 %v892, %v896
    %v899 = vrot.slane %v879, 2
    %v901 = vadd.f32 %v897, %v899
    %v902 = vmax.f32 %v895, 0.0
    %v903 = vsub.f32 0.0, %v895
    %v904 = vadd.f32 %v903, %v901
    %v905 = vmul.f32 %v904, 0.1
    %v906 = vadd.f32 %v895, %v905
    %v907 = vmul.f32 %v901, 0.2
    %v908 = vsub.f32 %v901, %v907
    %v909 = vrot.slane %v879, 4
    %v911 = vadd.f32 %v908, %v909
    %v912 = vmax.f32 %v902, %v906
    %v913 = vsub.f32 0.0, %v906
    %v914 = vadd.f32 %v913, %v911
    %v915 = vmul.f32 %v914, 0.1
    %v916 = vadd.f32 %v906, %v915
    %v917 = vmul.f32 %v911, 0.2
    %v918 = vsub.f32 %v911, %v917
    %v919 = vrot.slane %v879, 6
    %v921 = vadd.f32 %v918, %v919
    %v922 = vmax.f32 %v912, %v916
    %v923 = vsub.f32 0.0, %v916
    %v924 = vadd.f32 %v923, %v921
    %v925 = vmul.f32 %v924, 0.1
    %v926 = vadd.f32 %v916, %v925
    %v927 = vmul.f32 %v921, 0.2
    %v928 = vsub.f32 %v921, %v927
    %v929 = vadd.f32 %v928, %v882
    %v930 = vmax.f32 %v922, %v926
    %v931 = vsub.f32 0.0, %v926
    %v932 = vadd.f32 %v931, %v929
    %v933 = vmul.f32 %v932, 0.1
    %v934 = vadd.f32 %v926, %v933
    %v935 = vmul.f32 %v929, 0.2
    %v936 = vsub.f32 %v929, %v935
    %v938 = vrot.slane %v882, 2
    %v940 = vadd.f32 %v936, %v938
    %v941 = vmax.f32 %v930, %v934
    %v942 = vsub.f32 0.0, %v934
    %v943 = vadd.f32 %v942, %v940
    %v944 = vmul.f32 %v943, 0.1
    %v945 = vadd.f32 %v934, %v944
    %v946 = vmul.f32 %v940, 0.2
    %v947 = vsub.f32 %v940, %v946
    %v948 = vrot.slane %v882, 4
    %v950 = vadd.f32 %v947, %v948
    %v951 = vmax.f32 %v941, %v945
    %v952 = vsub.f32 0.0, %v945
    %v953 = vadd.f32 %v952, %v950
    %v954 = vmul.f32 %v953, 0.1
    %v955 = vadd.f32 %v945, %v954
    %v956 = vmul.f32 %v950, 0.2
    %v957 = vsub.f32 %v950, %v956
    %v958 = vrot.slane %v882, 6
    %v960 = vadd.f32 %v957, %v958
    %v961 = vmax.f32 %v951, %v955
    %v962 = vsub.f32 0.0, %v955
    %v963 = vadd.f32 %v962, %v960
    %v964 = vmul.f32 %v963, 0.1
    %v965 = vadd.f32 %v955, %v964
    %v966 = vmul.f32 %v960, 0.2
    %v967 = vsub.f32 %v960, %v966
    %v968 = vadd.f32 %v967, %v887
    %v969 = vmax.f32 %v961, %v965
    %v970 = vsub.f32 0.0, %v965
    %v971 = vadd.f32 %v970, %v968
    %v972 = vmul.f32 %v971, 0.1
    %v973 = vadd.f32 %v965, %v972
    %v974 = vmax.f32 %v969, %v973
    %v975 = vlaneseq
    %v976 = vand.u32 %v975, 127
    %vm977 = vcmp.lt.s32.totalorder %v976, 2
    %v978 = vsel %vm977, %v974, -inf
    %v979 = vsel %vm161, %v978, -inf
    %980 = vmax.xlane.f32.xlu0 %v979
    %v981 = vpop.xlane.xlu0 %980
    %v982 = vsub.f32 %v978, %v981
    %v983 = vmul.f32 %v982, 1.442695
    %v984 = vpow.pop %v983
    %v985 = vsel %vm977, %v984, 0.0
    %v986 = vsel %vm161, %v985, 0.0
    %987 = vadd.xlane.f32.xlu0 %v986
    %v988 = vpop.xlane.xlu0 %987
    %v989 = vrcp.pop %v988
    %v990 = vmul.f32 %v985, %v989
    %991 = vst [vmem:[#allocation10] sm:$0x3] %v990
    // Predicated region
    $region34: #{tpu_custom_call.1} parent=1 // pred_check
      _
    $region35: #{tpu_custom_call.1} parent=1 // pred_check_branch
      %993 = sbr.rel (0) target = $region37
    $region36: #{tpu_custom_call.1} parent=1 // pred_region
      %s995 = ssub.s32 32, 32
      %996 = vsyncadd [#allocation4], %s995
      %s998 = sshll.u32 [#allocation10], 4
      %s999 = int_to_ptr.vmem [resolvable:$true] %s998
      %1001 = dma.vmem_to_hbm [thread:$0]  %s999, 32, %s4, [#allocation4]
    $region37: #{tpu_custom_call.1} parent=1 // pred_fallthru
      _
    // Predicated region
    $region38: #{tpu_custom_call.1} parent=1 // pred_check
      _
    $region39: #{tpu_custom_call.1} parent=1 // pred_check_branch
      %1003 = sbr.rel (0) target = $region41
    $region40: #{tpu_custom_call.1} parent=1 // pred_region
      %1004 = dma.done [#allocation4], 32
    $region41: #{tpu_custom_call.1} parent=1 // pred_fallthru
      _
    %1005 = vsyncpa [#allocation3], 1
    %1006 = vsyncpa [#allocation6], 1
    %1007 = vsyncpa [#allocation9], 1
    %1008 = vsyncpa [#allocation4], 1

</llo_original>
